<compile_context>
chip_gen: v7x
topology: tpu7x:2x2x1
jax: 0.10.0
libtpu: 0.0.40
codegen_flags: <defaults>
</compile_context>

<pallas_src>
import math
import functools

import jax
import jax.numpy as jnp
from jax import lax
from jax.experimental import pallas as pl
from jax.experimental.pallas import tpu as pltpu


def _encoder_layer_kernel(*refs, num_heads, d_k, d_v, eps, compute_dtype,
                          has_mask, return_attn):
    """Grid = (batch,). One full encoder layer per step for one batch row."""
    it = iter(refs)
    x_ref = next(it)
    mask_ref = next(it) if has_mask else None
    wqkv_ref = next(it)
    wfc_ref = next(it)
    g1_ref = next(it)
    b1_ref = next(it)
    w1_ref = next(it)
    w2_ref = next(it)
    g2_ref = next(it)
    b2_ref = next(it)
    out_ref = next(it)
    attn_ref = next(it) if return_attn else None

    x = x_ref[...]                                     # [L, E] (input dtype)
    xf = x.astype(jnp.float32)
    xc = x.astype(compute_dtype)

    # Fused QKV projection: one lane-dense matmul, f32 accumulation on the MXU.
    qkv = jnp.dot(xc, wqkv_ref[...], preferred_element_type=jnp.float32)
    qkv = qkv.astype(compute_dtype)                    # cast the slab once
    hdk = num_heads * d_k

    if has_mask:
        neg = jnp.float32(-1e9)
        mask = mask_ref[...] > 0                       # [L, L], shared by heads

    scale = 1.0 / math.sqrt(d_k)
    ctx_parts = []
    for h in range(num_heads):                         # statically unrolled
        qh = qkv[:, h * d_k:(h + 1) * d_k]                         # [L, d_k]
        kh = qkv[:, hdk + h * d_k: hdk + (h + 1) * d_k]            # [L, d_k]
        vh = qkv[:, 2 * hdk + h * d_v: 2 * hdk + (h + 1) * d_v]    # [L, d_v]

        # Contract the d_k axes directly — no kh.T materialisation.
        s = lax.dot_general(qh, kh, (((1,), (1,)), ((), ())),
                            preferred_element_type=jnp.float32) * scale
        if has_mask:
            s = jnp.where(mask, neg, s)                # masked_fill_(mask, -1e9)

        # Softmax in f32.
        s = s - jnp.max(s, axis=-1, keepdims=True)
        p = jnp.exp(s)
        denom = jnp.sum(p, axis=-1, keepdims=True)
        if return_attn:
            attn = p / denom                           # exact: rows sum to 1
            attn_ref[h] = attn.astype(attn_ref.dtype)
        else:
            attn = p * pl.reciprocal(denom, approx=True)   # EUP slot

        ctx_parts.append(jnp.dot(attn.astype(compute_dtype), vh,
                                 preferred_element_type=jnp.float32))

    ctx = jnp.concatenate(ctx_parts, axis=-1)          # [L, H*d_v] f32
    # Single dense output projection across all heads.
    proj = jnp.dot(ctx.astype(compute_dtype), wfc_ref[...],
                   preferred_element_type=jnp.float32)             # [L, E]

    # Dropout(p=0.1) == identity (inference).  Residual + LayerNorm 1 (f32).
    y = proj + xf
    mean = jnp.mean(y, axis=-1, keepdims=True)
    var = jnp.mean(jnp.square(y - mean), axis=-1, keepdims=True)
    y1 = (y - mean) * lax.rsqrt(var + eps)
    y1 = y1 * g1_ref[...] + b1_ref[...]

    # Position-wise FFN: relu(y1 @ W1) @ W2, residual, LayerNorm 2.
    hid = jnp.dot(y1.astype(compute_dtype), w1_ref[...],
                  preferred_element_type=jnp.float32)              # [L, d_ff]
    hid = jnp.maximum(hid, 0.0)
    ff = jnp.dot(hid.astype(compute_dtype), w2_ref[...],
                 preferred_element_type=jnp.float32)               # [L, E]
    z = ff + y1
    mean2 = jnp.mean(z, axis=-1, keepdims=True)
    var2 = jnp.mean(jnp.square(z - mean2), axis=-1, keepdims=True)
    z = (z - mean2) * lax.rsqrt(var2 + eps)
    z = z * g2_ref[...] + b2_ref[...]
    out_ref[...] = z.astype(out_ref.dtype)


def encoder_layer(x, params, *, num_heads, d_k, d_v, eps=1e-5,
                  compute_dtype=jnp.float32, attn_mask=None, return_attn=True):
    """x: [B, L, E]. Returns (output [B, L, E], attn [B, H, L, L] or None)."""
    B, L, E = x.shape

    # Host-side weight fusion / layout / pre-cast (PyTorch Linear is [out, in]).
    w_qkv = jnp.concatenate(
        [params["w_q"].T, params["w_k"].T, params["w_v"].T], axis=1
    ).astype(compute_dtype)                                 # [E, 2*H*d_k + H*d_v]
    w_fc = params["fc"].T.astype(compute_dtype)             # [H*d_v, E]
    w1t = params["ffn_w1"].T.astype(compute_dtype)          # [E, d_ff]
    w2t = params["ffn_w2"].T.astype(compute_dtype)          # [d_ff, E]
    g1 = params["ln1_gamma"].reshape(1, E).astype(jnp.float32)
    b1 = params["ln1_beta"].reshape(1, E).astype(jnp.float32)
    g2 = params["ln2_gamma"].reshape(1, E).astype(jnp.float32)
    b2 = params["ln2_beta"].reshape(1, E).astype(jnp.float32)

    has_mask = attn_mask is not None

    kernel = functools.partial(
        _encoder_layer_kernel, num_heads=num_heads, d_k=d_k, d_v=d_v, eps=eps,
        compute_dtype=compute_dtype, has_mask=has_mask, return_attn=return_attn)

    def _full(shape):
        # Fully-resident (grid-invariant) array.
        # TODO(synk): pipeline_mode=pl.Buffered(1) at realistic E/d_ff.
        return pl.BlockSpec(tuple(shape), lambda b: (0,) * len(shape))

    in_specs = [pl.BlockSpec((None, L, E), lambda b: (b, 0, 0))]
    args = [x]
    if has_mask:
        in_specs.append(pl.BlockSpec((None, L, L), lambda b: (b, 0, 0)))
        args.append(attn_mask.astype(jnp.float32))
    in_specs += [_full(w_qkv.shape), _full(w_fc.shape),
                 _full(g1.shape), _full(b1.shape),
                 _full(w1t.shape), _full(w2t.shape),
                 _full(g2.shape), _full(b2.shape)]
    args += [w_qkv, w_fc, g1, b1, w1t, w2t, g2, b2]

    out_shapes = [jax.ShapeDtypeStruct((B, L, E), x.dtype)]
    out_specs = [pl.BlockSpec((None, L, E), lambda b: (b, 0, 0))]
    if return_attn:
        out_shapes.append(jax.ShapeDtypeStruct((B, num_heads, L, L), jnp.float32))
        out_specs.append(pl.BlockSpec((None, num_heads, L, L),
                                      lambda b: (b, 0, 0, 0)))

    res = pl.pallas_call(
        kernel,
        out_shape=tuple(out_shapes),
        grid_spec=pltpu.PrefetchScalarGridSpec(
            num_scalar_prefetch=0,
            grid=(B,),
            in_specs=in_specs,
            out_specs=out_specs,
        ),
        compiler_params=pltpu.CompilerParams(
            dimension_semantics=("parallel",)),
    )(*args)

    out = res[0]
    attn = res[1] if return_attn else None
    return out, attn


def _layer_norm(y, gamma, beta, eps):
    mean = jnp.mean(y, axis=-1, keepdims=True)
    var = jnp.mean(jnp.square(y - mean), axis=-1, keepdims=True)
    return (y - mean) / jnp.sqrt(var + eps) * gamma + beta


def _reference(x, params, *, num_heads, d_k, d_v, eps=1e-5, attn_mask=None):
    """Pure-JAX reference mirroring the PyTorch forward (dropout = identity)."""
    B, L, E = x.shape
    qp = (x @ params["w_q"].T).reshape(B, L, num_heads, d_k).transpose(0, 2, 1, 3)
    kp = (x @ params["w_k"].T).reshape(B, L, num_heads, d_k).transpose(0, 2, 1, 3)
    vp = (x @ params["w_v"].T).reshape(B, L, num_heads, d_v).transpose(0, 2, 1, 3)
    scores = jnp.einsum("bhqd,bhkd->bhqk", qp, kp) / math.sqrt(d_k)
    if attn_mask is not None:
        scores = jnp.where(attn_mask[:, None, :, :] > 0, -1e9, scores)
    attn = jax.nn.softmax(scores, axis=-1)
    ctx = jnp.einsum("bhqk,bhkd->bhqd", attn, vp)
    ctx = ctx.transpose(0, 2, 1, 3).reshape(B, L, num_heads * d_v)
    y = _layer_norm(ctx @ params["fc"].T + x,
                    params["ln1_gamma"], params["ln1_beta"], eps)
    ff = jnp.maximum(y @ params["ffn_w1"].T, 0.0) @ params["ffn_w2"].T
    z = _layer_norm(ff + y, params["ln2_gamma"], params["ln2_beta"], eps)
    return z, attn


if __name__ == "__main__":
    # Small shapes consistent with the module's forward.
    B, L, E = 2, 8, 32
    num_heads, d_k, d_v, d_ff = 4, 8, 8, 64

    key = jax.random.PRNGKey(0)
    ks = jax.random.split(key, 10)
    x = jax.random.normal(ks[0], (B, L, E), jnp.float32)

    def init_linear(k, out_dim, in_dim):
        bound = 1.0 / math.sqrt(in_dim)
        return jax.random.uniform(k, (out_dim, in_dim), jnp.float32, -bound, bound)

    params = {
        "w_q": init_linear(ks[1], d_k * num_heads, E),
        "w_k": init_linear(ks[2], d_k * num_heads, E),
        "w_v": init_linear(ks[3], d_v * num_heads, E),
        "fc": init_linear(ks[4], E, num_heads * d_v),
        "ln1_gamma": 1.0 + 0.1 * jax.random.normal(ks[7], (E,), jnp.float32),
        "ln1_beta": 0.1 * jax.random.normal(ks[8], (E,), jnp.float32),
        "ffn_w1": init_linear(ks[5], d_ff, E),
        "ffn_w2": init_linear(ks[6], E, d_ff),
        "ln2_gamma": 1.0 + 0.1 * jax.random.normal(ks[9], (E,), jnp.float32),
        "ln2_beta": jnp.zeros((E,), jnp.float32),
    }

    # 1) f32 path, attention probabilities returned (module default, no mask).
    out, attn = encoder_layer(x, params, num_heads=num_heads, d_k=d_k, d_v=d_v)
    jax.block_until_ready((out, attn))
    out_ref, attn_ref = _reference(x, params, num_heads=num_heads, d_k=d_k, d_v=d_v)
    assert out.shape == (B, L, E) and attn.shape == (B, num_heads, L, L)
    assert jnp.allclose(out, out_ref, atol=2e-3, rtol=2e-3)
    assert jnp.allclose(attn, attn_ref, atol=1e-3, rtol=1e-3)

    # 2) f32 path with an attention mask (causal: mask positions j > i).
    causal = (jnp.arange(L)[None, :] > jnp.arange(L)[:, None]).astype(jnp.float32)
    mask = jnp.broadcast_to(causal, (B, L, L))
    out_m, attn_m = encoder_layer(x, params, num_heads=num_heads, d_k=d_k,
                                  d_v=d_v, attn_mask=mask)
    jax.block_until_ready((out_m, attn_m))
    out_mr, attn_mr = _reference(x, params, num_heads=num_heads, d_k=d_k,
                                 d_v=d_v, attn_mask=mask)
    assert jnp.allclose(out_m, out_mr, atol=2e-3, rtol=2e-3)
    assert jnp.allclose(attn_m, attn_mr, atol=1e-3, rtol=1e-3)

    # 3) Perf configuration: bf16 MXU operands, approx EUP reciprocal, and no
    #    attention-probability writeback.
    out_bf16, attn_none = encoder_layer(
        x, params, num_heads=num_heads, d_k=d_k, d_v=d_v,
        compute_dtype=jnp.bfloat16, return_attn=False)
    jax.block_until_ready(out_bf16)
    assert attn_none is None and out_bf16.shape == (B, L, E)
    assert jnp.allclose(out_bf16, out_ref, atol=1e-1, rtol=1e-1)

    print("KERNEL_OK")
</pallas_src>

<mosaic_0001>
module attributes {stable_mosaic.version = 11 : i64} {
  func.func @_encoder_layer_kernel(%arg0: i32, %arg1: memref<1x8x32xf32, #tpu.memory_space<vmem>>, %arg2: memref<32x96xf32, #tpu.memory_space<vmem>>, %arg3: memref<32x32xf32, #tpu.memory_space<vmem>>, %arg4: memref<1x32xf32, #tpu.memory_space<vmem>>, %arg5: memref<1x32xf32, #tpu.memory_space<vmem>>, %arg6: memref<32x64xf32, #tpu.memory_space<vmem>>, %arg7: memref<64x32xf32, #tpu.memory_space<vmem>>, %arg8: memref<1x32xf32, #tpu.memory_space<vmem>>, %arg9: memref<1x32xf32, #tpu.memory_space<vmem>>, %arg10: memref<1x8x32xf32, #tpu.memory_space<vmem>>, %arg11: memref<1x4x8x8xf32, #tpu.memory_space<vmem>>) attributes {dimension_semantics = [#tpu.dimension_semantics<parallel>], iteration_bounds = array<i64: 2>, scalar_prefetch = 0 : i64, scratch_operands = 0 : i64, tpu.core_type = #tpu.core_type<tc>, window_params = [{transform_indices = @transform_0, window_bounds = array<i64: 1, 8, 32>}, {pipeline_mode = #tpu.pipeline_mode<synchronous>, transform_indices = @transform_1, window_bounds = array<i64: 32, 96>}, {pipeline_mode = #tpu.pipeline_mode<synchronous>, transform_indices = @transform_2, window_bounds = array<i64: 32, 32>}, {pipeline_mode = #tpu.pipeline_mode<synchronous>, transform_indices = @transform_3, window_bounds = array<i64: 1, 32>}, {pipeline_mode = #tpu.pipeline_mode<synchronous>, transform_indices = @transform_4, window_bounds = array<i64: 1, 32>}, {pipeline_mode = #tpu.pipeline_mode<synchronous>, transform_indices = @transform_5, window_bounds = array<i64: 32, 64>}, {pipeline_mode = #tpu.pipeline_mode<synchronous>, transform_indices = @transform_6, window_bounds = array<i64: 64, 32>}, {pipeline_mode = #tpu.pipeline_mode<synchronous>, transform_indices = @transform_7, window_bounds = array<i64: 1, 32>}, {pipeline_mode = #tpu.pipeline_mode<synchronous>, transform_indices = @transform_8, window_bounds = array<i64: 1, 32>}, {transform_indices = @transform_9, window_bounds = array<i64: 1, 8, 32>}, {transform_indices = @transform_10, window_bounds = array<i64: 1, 4, 8, 8>}]} {
    %c0 = arith.constant 0 : index
    %c0_0 = arith.constant 0 : index
    %c0_1 = arith.constant 0 : index
    %0 = vector.load %arg1[%c0, %c0_0, %c0_1] : memref<1x8x32xf32, #tpu.memory_space<vmem>>, vector<1x8x32xf32>
    %1 = vector.shape_cast %0 : vector<1x8x32xf32> to vector<8x32xf32>
    %c0_2 = arith.constant 0 : index
    %c0_3 = arith.constant 0 : index
    %2 = vector.load %arg2[%c0_2, %c0_3] : memref<32x96xf32, #tpu.memory_space<vmem>>, vector<32x96xf32>
    %cst = arith.constant dense<0.000000e+00> : vector<8x96xf32>
    %3 = tpu.matmul %1, %2, %cst {dimension_numbers = #tpu.dot_dimension_numbers<[1], [0], [0], [1], [0, 0, 1, 1], [], []>} : vector<8x32xf32>, vector<32x96xf32>, vector<8x96xf32> -> vector<8x96xf32>
    %4 = vector.extract_strided_slice %3 {offsets = [0, 0], sizes = [8, 8], strides = [1, 1]} : vector<8x96xf32> to vector<8x8xf32>
    %5 = vector.extract_strided_slice %3 {offsets = [0, 32], sizes = [8, 8], strides = [1, 1]} : vector<8x96xf32> to vector<8x8xf32>
    %6 = vector.extract_strided_slice %3 {offsets = [0, 64], sizes = [8, 8], strides = [1, 1]} : vector<8x96xf32> to vector<8x8xf32>
    %cst_4 = arith.constant dense<0.000000e+00> : vector<8x8xf32>
    %7 = tpu.matmul %4, %5, %cst_4 {dimension_numbers = #tpu.dot_dimension_numbers<[1], [1], [0], [0], [0, 0, 1, 0], [], []>} : vector<8x8xf32>, vector<8x8xf32>, vector<8x8xf32> -> vector<8x8xf32>
    %cst_5 = arith.constant 0.353553385 : f32
    %8 = vector.broadcast %cst_5 : f32 to vector<8x8xf32>
    %9 = arith.mulf %7, %8 : vector<8x8xf32>
    %cst_6 = arith.constant dense<0xFF800000> : vector<8xf32>
    %10 = vector.multi_reduction <maximumf>, %9, %cst_6 [1] : vector<8x8xf32> to vector<8xf32>
    %11 = vector.shape_cast %10 : vector<8xf32> to vector<8x1xf32>
    %12 = vector.broadcast %11 : vector<8x1xf32> to vector<8x8xf32>
    %13 = arith.subf %9, %12 : vector<8x8xf32>
    %14 = math.exp %13 : vector<8x8xf32>
    %cst_7 = arith.constant dense<0.000000e+00> : vector<8xf32>
    %15 = vector.multi_reduction <add>, %14, %cst_7 [1] : vector<8x8xf32> to vector<8xf32>
    %16 = vector.shape_cast %15 : vector<8xf32> to vector<8x1xf32>
    %17 = vector.broadcast %16 : vector<8x1xf32> to vector<8x8xf32>
    %18 = arith.divf %14, %17 : vector<8x8xf32>
    %c0_8 = arith.constant 0 : index
    %c0_9 = arith.constant 0 : index
    %c0_10 = arith.constant 0 : index
    %c0_11 = arith.constant 0 : index
    %19 = vector.load %arg11[%c0_8, %c0_9, %c0_10, %c0_11] : memref<1x4x8x8xf32, #tpu.memory_space<vmem>>, vector<1x1x8x8xf32>
    %20 = vector.shape_cast %19 : vector<1x1x8x8xf32> to vector<8x8xf32>
    %21 = vector.shape_cast %18 : vector<8x8xf32> to vector<1x1x8x8xf32>
    tpu.vector_store %arg11[%c0_8, %c0_9, %c0_10, %c0_11], %21 {strides = array<i32>} : memref<1x4x8x8xf32, #tpu.memory_space<vmem>>, vector<1x1x8x8xf32>,
    %cst_12 = arith.constant dense<0.000000e+00> : vector<8x8xf32>
    %22 = tpu.matmul %18, %6, %cst_12 {dimension_numbers = #tpu.dot_dimension_numbers<[1], [0], [0], [1], [0, 0, 1, 1], [], []>} : vector<8x8xf32>, vector<8x8xf32>, vector<8x8xf32> -> vector<8x8xf32>
    %23 = vector.extract_strided_slice %3 {offsets = [0, 8], sizes = [8, 8], strides = [1, 1]} : vector<8x96xf32> to vector<8x8xf32>
    %24 = vector.extract_strided_slice %3 {offsets = [0, 40], sizes = [8, 8], strides = [1, 1]} : vector<8x96xf32> to vector<8x8xf32>
    %25 = vector.extract_strided_slice %3 {offsets = [0, 72], sizes = [8, 8], strides = [1, 1]} : vector<8x96xf32> to vector<8x8xf32>
    %cst_13 = arith.constant dense<0.000000e+00> : vector<8x8xf32>
    %26 = tpu.matmul %23, %24, %cst_13 {dimension_numbers = #tpu.dot_dimension_numbers<[1], [1], [0], [0], [0, 0, 1, 0], [], []>} : vector<8x8xf32>, vector<8x8xf32>, vector<8x8xf32> -> vector<8x8xf32>
    %cst_14 = arith.constant 0.353553385 : f32
    %27 = vector.broadcast %cst_14 : f32 to vector<8x8xf32>
    %28 = arith.mulf %26, %27 : vector<8x8xf32>
    %cst_15 = arith.constant dense<0xFF800000> : vector<8xf32>
    %29 = vector.multi_reduction <maximumf>, %28, %cst_15 [1] : vector<8x8xf32> to vector<8xf32>
    %30 = vector.shape_cast %29 : vector<8xf32> to vector<8x1xf32>
    %31 = vector.broadcast %30 : vector<8x1xf32> to vector<8x8xf32>
    %32 = arith.subf %28, %31 : vector<8x8xf32>
    %33 = math.exp %32 : vector<8x8xf32>
    %cst_16 = arith.constant dense<0.000000e+00> : vector<8xf32>
    %34 = vector.multi_reduction <add>, %33, %cst_16 [1] : vector<8x8xf32> to vector<8xf32>
    %35 = vector.shape_cast %34 : vector<8xf32> to vector<8x1xf32>
    %36 = vector.broadcast %35 : vector<8x1xf32> to vector<8x8xf32>
    %37 = arith.divf %33, %36 : vector<8x8xf32>
    %c0_17 = arith.constant 0 : index
    %c1 = arith.constant 1 : index
    %c0_18 = arith.constant 0 : index
    %c0_19 = arith.constant 0 : index
    %38 = vector.load %arg11[%c0_17, %c1, %c0_18, %c0_19] : memref<1x4x8x8xf32, #tpu.memory_space<vmem>>, vector<1x1x8x8xf32>
    %39 = vector.shape_cast %38 : vector<1x1x8x8xf32> to vector<8x8xf32>
    %40 = vector.shape_cast %37 : vector<8x8xf32> to vector<1x1x8x8xf32>
    tpu.vector_store %arg11[%c0_17, %c1, %c0_18, %c0_19], %40 {strides = array<i32>} : memref<1x4x8x8xf32, #tpu.memory_space<vmem>>, vector<1x1x8x8xf32>,
    %cst_20 = arith.constant dense<0.000000e+00> : vector<8x8xf32>
    %41 = tpu.matmul %37, %25, %cst_20 {dimension_numbers = #tpu.dot_dimension_numbers<[1], [0], [0], [1], [0, 0, 1, 1], [], []>} : vector<8x8xf32>, vector<8x8xf32>, vector<8x8xf32> -> vector<8x8xf32>
    %42 = vector.extract_strided_slice %3 {offsets = [0, 16], sizes = [8, 8], strides = [1, 1]} : vector<8x96xf32> to vector<8x8xf32>
    %43 = vector.extract_strided_slice %3 {offsets = [0, 48], sizes = [8, 8], strides = [1, 1]} : vector<8x96xf32> to vector<8x8xf32>
    %44 = vector.extract_strided_slice %3 {offsets = [0, 80], sizes = [8, 8], strides = [1, 1]} : vector<8x96xf32> to vector<8x8xf32>
    %cst_21 = arith.constant dense<0.000000e+00> : vector<8x8xf32>
    %45 = tpu.matmul %42, %43, %cst_21 {dimension_numbers = #tpu.dot_dimension_numbers<[1], [1], [0], [0], [0, 0, 1, 0], [], []>} : vector<8x8xf32>, vector<8x8xf32>, vector<8x8xf32> -> vector<8x8xf32>
    %cst_22 = arith.constant 0.353553385 : f32
    %46 = vector.broadcast %cst_22 : f32 to vector<8x8xf32>
    %47 = arith.mulf %45, %46 : vector<8x8xf32>
    %cst_23 = arith.constant dense<0xFF800000> : vector<8xf32>
    %48 = vector.multi_reduction <maximumf>, %47, %cst_23 [1] : vector<8x8xf32> to vector<8xf32>
    %49 = vector.shape_cast %48 : vector<8xf32> to vector<8x1xf32>
    %50 = vector.broadcast %49 : vector<8x1xf32> to vector<8x8xf32>
    %51 = arith.subf %47, %50 : vector<8x8xf32>
    %52 = math.exp %51 : vector<8x8xf32>
    %cst_24 = arith.constant dense<0.000000e+00> : vector<8xf32>
    %53 = vector.multi_reduction <add>, %52, %cst_24 [1] : vector<8x8xf32> to vector<8xf32>
    %54 = vector.shape_cast %53 : vector<8xf32> to vector<8x1xf32>
    %55 = vector.broadcast %54 : vector<8x1xf32> to vector<8x8xf32>
    %56 = arith.divf %52, %55 : vector<8x8xf32>
    %c0_25 = arith.constant 0 : index
    %c2 = arith.constant 2 : index
    %c0_26 = arith.constant 0 : index
    %c0_27 = arith.constant 0 : index
    %57 = vector.load %arg11[%c0_25, %c2, %c0_26, %c0_27] : memref<1x4x8x8xf32, #tpu.memory_space<vmem>>, vector<1x1x8x8xf32>
    %58 = vector.shape_cast %57 : vector<1x1x8x8xf32> to vector<8x8xf32>
    %59 = vector.shape_cast %56 : vector<8x8xf32> to vector<1x1x8x8xf32>
    tpu.vector_store %arg11[%c0_25, %c2, %c0_26, %c0_27], %59 {strides = array<i32>} : memref<1x4x8x8xf32, #tpu.memory_space<vmem>>, vector<1x1x8x8xf32>,
    %cst_28 = arith.constant dense<0.000000e+00> : vector<8x8xf32>
    %60 = tpu.matmul %56, %44, %cst_28 {dimension_numbers = #tpu.dot_dimension_numbers<[1], [0], [0], [1], [0, 0, 1, 1], [], []>} : vector<8x8xf32>, vector<8x8xf32>, vector<8x8xf32> -> vector<8x8xf32>
    %61 = vector.extract_strided_slice %3 {offsets = [0, 24], sizes = [8, 8], strides = [1, 1]} : vector<8x96xf32> to vector<8x8xf32>
    %62 = vector.extract_strided_slice %3 {offsets = [0, 56], sizes = [8, 8], strides = [1, 1]} : vector<8x96xf32> to vector<8x8xf32>
    %63 = vector.extract_strided_slice %3 {offsets = [0, 88], sizes = [8, 8], strides = [1, 1]} : vector<8x96xf32> to vector<8x8xf32>
    %cst_29 = arith.constant dense<0.000000e+00> : vector<8x8xf32>
    %64 = tpu.matmul %61, %62, %cst_29 {dimension_numbers = #tpu.dot_dimension_numbers<[1], [1], [0], [0], [0, 0, 1, 0], [], []>} : vector<8x8xf32>, vector<8x8xf32>, vector<8x8xf32> -> vector<8x8xf32>
    %cst_30 = arith.constant 0.353553385 : f32
    %65 = vector.broadcast %cst_30 : f32 to vector<8x8xf32>
    %66 = arith.mulf %64, %65 : vector<8x8xf32>
    %cst_31 = arith.constant dense<0xFF800000> : vector<8xf32>
    %67 = vector.multi_reduction <maximumf>, %66, %cst_31 [1] : vector<8x8xf32> to vector<8xf32>
    %68 = vector.shape_cast %67 : vector<8xf32> to vector<8x1xf32>
    %69 = vector.broadcast %68 : vector<8x1xf32> to vector<8x8xf32>
    %70 = arith.subf %66, %69 : vector<8x8xf32>
    %71 = math.exp %70 : vector<8x8xf32>
    %cst_32 = arith.constant dense<0.000000e+00> : vector<8xf32>
    %72 = vector.multi_reduction <add>, %71, %cst_32 [1] : vector<8x8xf32> to vector<8xf32>
    %73 = vector.shape_cast %72 : vector<8xf32> to vector<8x1xf32>
    %74 = vector.broadcast %73 : vector<8x1xf32> to vector<8x8xf32>
    %75 = arith.divf %71, %74 : vector<8x8xf32>
    %c0_33 = arith.constant 0 : index
    %c3 = arith.constant 3 : index
    %c0_34 = arith.constant 0 : index
    %c0_35 = arith.constant 0 : index
    %76 = vector.load %arg11[%c0_33, %c3, %c0_34, %c0_35] : memref<1x4x8x8xf32, #tpu.memory_space<vmem>>, vector<1x1x8x8xf32>
    %77 = vector.shape_cast %76 : vector<1x1x8x8xf32> to vector<8x8xf32>
    %78 = vector.shape_cast %75 : vector<8x8xf32> to vector<1x1x8x8xf32>
    tpu.vector_store %arg11[%c0_33, %c3, %c0_34, %c0_35], %78 {strides = array<i32>} : memref<1x4x8x8xf32, #tpu.memory_space<vmem>>, vector<1x1x8x8xf32>,
    %cst_36 = arith.constant dense<0.000000e+00> : vector<8x8xf32>
    %79 = tpu.matmul %75, %63, %cst_36 {dimension_numbers = #tpu.dot_dimension_numbers<[1], [0], [0], [1], [0, 0, 1, 1], [], []>} : vector<8x8xf32>, vector<8x8xf32>, vector<8x8xf32> -> vector<8x8xf32>
    %80 = tpu.concatenate %22, %41, %60, %79 in 1 : vector<8x8xf32>, vector<8x8xf32>, vector<8x8xf32>, vector<8x8xf32> -> vector<8x32xf32>
    %c0_37 = arith.constant 0 : index
    %c0_38 = arith.constant 0 : index
    %81 = vector.load %arg3[%c0_37, %c0_38] : memref<32x32xf32, #tpu.memory_space<vmem>>, vector<32x32xf32>
    %cst_39 = arith.constant dense<0.000000e+00> : vector<8x32xf32>
    %82 = tpu.matmul %80, %81, %cst_39 {dimension_numbers = #tpu.dot_dimension_numbers<[1], [0], [0], [1], [0, 0, 1, 1], [], []>} : vector<8x32xf32>, vector<32x32xf32>, vector<8x32xf32> -> vector<8x32xf32>
    %83 = arith.addf %82, %1 : vector<8x32xf32>
    %cst_40 = arith.constant dense<0.000000e+00> : vector<8xf32>
    %84 = vector.multi_reduction <add>, %83, %cst_40 [1] : vector<8x32xf32> to vector<8xf32>
    %85 = vector.shape_cast %84 : vector<8xf32> to vector<8x1xf32>
    %cst_41 = arith.constant 3.200000e+01 : f32
    %86 = vector.broadcast %cst_41 : f32 to vector<8x1xf32>
    %87 = arith.divf %85, %86 : vector<8x1xf32>
    %88 = vector.broadcast %87 : vector<8x1xf32> to vector<8x32xf32>
    %89 = arith.subf %83, %88 : vector<8x32xf32>
    %90 = arith.mulf %89, %89 : vector<8x32xf32>
    %cst_42 = arith.constant dense<0.000000e+00> : vector<8xf32>
    %91 = vector.multi_reduction <add>, %90, %cst_42 [1] : vector<8x32xf32> to vector<8xf32>
    %92 = vector.shape_cast %91 : vector<8xf32> to vector<8x1xf32>
    %cst_43 = arith.constant 3.200000e+01 : f32
    %93 = vector.broadcast %cst_43 : f32 to vector<8x1xf32>
    %94 = arith.divf %92, %93 : vector<8x1xf32>
    %95 = vector.broadcast %87 : vector<8x1xf32> to vector<8x32xf32>
    %96 = arith.subf %83, %95 : vector<8x32xf32>
    %cst_44 = arith.constant 9.99999974E-6 : f32
    %97 = vector.broadcast %cst_44 : f32 to vector<8x1xf32>
    %98 = arith.addf %94, %97 : vector<8x1xf32>
    %99 = math.rsqrt %98 : vector<8x1xf32>
    %100 = vector.broadcast %99 : vector<8x1xf32> to vector<8x32xf32>
    %101 = arith.mulf %96, %100 : vector<8x32xf32>
    %c0_45 = arith.constant 0 : index
    %c0_46 = arith.constant 0 : index
    %102 = vector.load %arg4[%c0_45, %c0_46] : memref<1x32xf32, #tpu.memory_space<vmem>>, vector<1x32xf32>
    %103 = vector.broadcast %102 : vector<1x32xf32> to vector<8x32xf32>
    %104 = arith.mulf %101, %103 : vector<8x32xf32>
    %c0_47 = arith.constant 0 : index
    %c0_48 = arith.constant 0 : index
    %105 = vector.load %arg5[%c0_47, %c0_48] : memref<1x32xf32, #tpu.memory_space<vmem>>, vector<1x32xf32>
    %106 = vector.broadcast %105 : vector<1x32xf32> to vector<8x32xf32>
    %107 = arith.addf %104, %106 : vector<8x32xf32>
    %c0_49 = arith.constant 0 : index
    %c0_50 = arith.constant 0 : index
    %108 = vector.load %arg6[%c0_49, %c0_50] : memref<32x64xf32, #tpu.memory_space<vmem>>, vector<32x64xf32>
    %cst_51 = arith.constant dense<0.000000e+00> : vector<8x64xf32>
    %109 = tpu.matmul %107, %108, %cst_51 {dimension_numbers = #tpu.dot_dimension_numbers<[1], [0], [0], [1], [0, 0, 1, 1], [], []>} : vector<8x32xf32>, vector<32x64xf32>, vector<8x64xf32> -> vector<8x64xf32>
    %cst_52 = arith.constant 0.000000e+00 : f32
    %110 = vector.broadcast %cst_52 : f32 to vector<8x64xf32>
    %111 = arith.maximumf %109, %110 : vector<8x64xf32>
    %c0_53 = arith.constant 0 : index
    %c0_54 = arith.constant 0 : index
    %112 = vector.load %arg7[%c0_53, %c0_54] : memref<64x32xf32, #tpu.memory_space<vmem>>, vector<64x32xf32>
    %cst_55 = arith.constant dense<0.000000e+00> : vector<8x32xf32>
    %113 = tpu.matmul %111, %112, %cst_55 {dimension_numbers = #tpu.dot_dimension_numbers<[1], [0], [0], [1], [0, 0, 1, 1], [], []>} : vector<8x64xf32>, vector<64x32xf32>, vector<8x32xf32> -> vector<8x32xf32>
    %114 = arith.addf %113, %107 : vector<8x32xf32>
    %cst_56 = arith.constant dense<0.000000e+00> : vector<8xf32>
    %115 = vector.multi_reduction <add>, %114, %cst_56 [1] : vector<8x32xf32> to vector<8xf32>
    %116 = vector.shape_cast %115 : vector<8xf32> to vector<8x1xf32>
    %cst_57 = arith.constant 3.200000e+01 : f32
    %117 = vector.broadcast %cst_57 : f32 to vector<8x1xf32>
    %118 = arith.divf %116, %117 : vector<8x1xf32>
    %119 = vector.broadcast %118 : vector<8x1xf32> to vector<8x32xf32>
    %120 = arith.subf %114, %119 : vector<8x32xf32>
    %121 = arith.mulf %120, %120 : vector<8x32xf32>
    %cst_58 = arith.constant dense<0.000000e+00> : vector<8xf32>
    %122 = vector.multi_reduction <add>, %121, %cst_58 [1] : vector<8x32xf32> to vector<8xf32>
    %123 = vector.shape_cast %122 : vector<8xf32> to vector<8x1xf32>
    %cst_59 = arith.constant 3.200000e+01 : f32
    %124 = vector.broadcast %cst_59 : f32 to vector<8x1xf32>
    %125 = arith.divf %123, %124 : vector<8x1xf32>
    %126 = vector.broadcast %118 : vector<8x1xf32> to vector<8x32xf32>
    %127 = arith.subf %114, %126 : vector<8x32xf32>
    %cst_60 = arith.constant 9.99999974E-6 : f32
    %128 = vector.broadcast %cst_60 : f32 to vector<8x1xf32>
    %129 = arith.addf %125, %128 : vector<8x1xf32>
    %130 = math.rsqrt %129 : vector<8x1xf32>
    %131 = vector.broadcast %130 : vector<8x1xf32> to vector<8x32xf32>
    %132 = arith.mulf %127, %131 : vector<8x32xf32>
    %c0_61 = arith.constant 0 : index
    %c0_62 = arith.constant 0 : index
    %133 = vector.load %arg8[%c0_61, %c0_62] : memref<1x32xf32, #tpu.memory_space<vmem>>, vector<1x32xf32>
    %134 = vector.broadcast %133 : vector<1x32xf32> to vector<8x32xf32>
    %135 = arith.mulf %132, %134 : vector<8x32xf32>
    %c0_63 = arith.constant 0 : index
    %c0_64 = arith.constant 0 : index
    %136 = vector.load %arg9[%c0_63, %c0_64] : memref<1x32xf32, #tpu.memory_space<vmem>>, vector<1x32xf32>
    %137 = vector.broadcast %136 : vector<1x32xf32> to vector<8x32xf32>
    %138 = arith.addf %135, %137 : vector<8x32xf32>
    %c0_65 = arith.constant 0 : index
    %c0_66 = arith.constant 0 : index
    %c0_67 = arith.constant 0 : index
    %139 = vector.load %arg10[%c0_65, %c0_66, %c0_67] : memref<1x8x32xf32, #tpu.memory_space<vmem>>, vector<1x8x32xf32>
    %140 = vector.shape_cast %139 : vector<1x8x32xf32> to vector<8x32xf32>
    %141 = vector.shape_cast %138 : vector<8x32xf32> to vector<1x8x32xf32>
    tpu.vector_store %arg10[%c0_65, %c0_66, %c0_67], %141 {strides = array<i32>} : memref<1x8x32xf32, #tpu.memory_space<vmem>>, vector<1x8x32xf32>,
    return
  }
  func.func @transform_0(%arg0: i32) -> (i32, i32, i32) {
    %c0_i32 = arith.constant 0 : i32
    %c0_i32_0 = arith.constant 0 : i32
    %c0_i32_1 = arith.constant 0 : i32
    return %arg0, %c0_i32, %c0_i32_0 : i32, i32, i32
  }
  func.func @transform_1(%arg0: i32) -> (i32, i32) {
    %c0_i32 = arith.constant 0 : i32
    %c0_i32_0 = arith.constant 0 : i32
    %c0_i32_1 = arith.constant 0 : i32
    return %c0_i32, %c0_i32_0 : i32, i32
  }
  func.func @transform_2(%arg0: i32) -> (i32, i32) {
    %c0_i32 = arith.constant 0 : i32
    %c0_i32_0 = arith.constant 0 : i32
    %c0_i32_1 = arith.constant 0 : i32
    return %c0_i32, %c0_i32_0 : i32, i32
  }
  func.func @transform_3(%arg0: i32) -> (i32, i32) {
    %c0_i32 = arith.constant 0 : i32
    %c0_i32_0 = arith.constant 0 : i32
    %c0_i32_1 = arith.constant 0 : i32
    return %c0_i32, %c0_i32_0 : i32, i32
  }
  func.func @transform_4(%arg0: i32) -> (i32, i32) {
    %c0_i32 = arith.constant 0 : i32
    %c0_i32_0 = arith.constant 0 : i32
    %c0_i32_1 = arith.constant 0 : i32
    return %c0_i32, %c0_i32_0 : i32, i32
  }
  func.func @transform_5(%arg0: i32) -> (i32, i32) {
    %c0_i32 = arith.constant 0 : i32
    %c0_i32_0 = arith.constant 0 : i32
    %c0_i32_1 = arith.constant 0 : i32
    return %c0_i32, %c0_i32_0 : i32, i32
  }
  func.func @transform_6(%arg0: i32) -> (i32, i32) {
    %c0_i32 = arith.constant 0 : i32
    %c0_i32_0 = arith.constant 0 : i32
    %c0_i32_1 = arith.constant 0 : i32
    return %c0_i32, %c0_i32_0 : i32, i32
  }
  func.func @transform_7(%arg0: i32) -> (i32, i32) {
    %c0_i32 = arith.constant 0 : i32
    %c0_i32_0 = arith.constant 0 : i32
    %c0_i32_1 = arith.constant 0 : i32
    return %c0_i32, %c0_i32_0 : i32, i32
  }
  func.func @transform_8(%arg0: i32) -> (i32, i32) {
    %c0_i32 = arith.constant 0 : i32
    %c0_i32_0 = arith.constant 0 : i32
    %c0_i32_1 = arith.constant 0 : i32
    return %c0_i32, %c0_i32_0 : i32, i32
  }
  func.func @transform_9(%arg0: i32) -> (i32, i32, i32) {
    %c0_i32 = arith.constant 0 : i32
    %c0_i32_0 = arith.constant 0 : i32
    %c0_i32_1 = arith.constant 0 : i32
    return %arg0, %c0_i32, %c0_i32_0 : i32, i32, i32
  }
  func.func @transform_10(%arg0: i32) -> (i32, i32, i32, i32) {
    %c0_i32 = arith.constant 0 : i32
    %c0_i32_0 = arith.constant 0 : i32
    %c0_i32_1 = arith.constant 0 : i32
    %c0_i32_2 = arith.constant 0 : i32
    return %arg0, %c0_i32, %c0_i32_0, %c0_i32_1 : i32, i32, i32, i32
  }
}

</mosaic_0001>

<llo_original>
// kernel: tpu_custom_call.1
$region0: #{tpu_custom_call.1}
  #allocation0 [shape = 'u32[]', space=smem, size = 0x4, offset = 0x4, fixed_abs, tag = 'smem constant byte address 0x4 - core index']
  #allocation1 [shape = 'u32[144,128]{1,0:T(1,128)}', space=vmem, size = 0x12000, scoped, tag = 'internal scratch']
  %s0 = inlined_call_operand.hbm [shape: f32[2,8,32], index: 0, kind: input, shape index: {}]
  %s1 = inlined_call_operand.vmem [shape: f32[32,96], index: 1, kind: input, shape index: {}]
  %s2 = inlined_call_operand.vmem [shape: f32[32,32], index: 2, kind: input, shape index: {}]
  %s3 = inlined_call_operand.vmem [shape: f32[1,32], index: 3, kind: input, shape index: {}]
  %s4 = inlined_call_operand.vmem [shape: f32[1,32], index: 4, kind: input, shape index: {}]
  %s5 = inlined_call_operand.vmem [shape: f32[32,64], index: 5, kind: input, shape index: {}]
  %s6 = inlined_call_operand.vmem [shape: f32[64,32], index: 6, kind: input, shape index: {}]
  %s7 = inlined_call_operand.vmem [shape: f32[1,32], index: 7, kind: input, shape index: {}]
  %s8 = inlined_call_operand.vmem [shape: f32[1,32], index: 8, kind: input, shape index: {}]
  %s9 = inlined_call_operand.hbm [shape: f32[2,8,32], index: 9, kind: output, shape index: {0}]
  %s10 = inlined_call_operand.hbm [shape: f32[2,4,8,8], index: 10, kind: output, shape index: {1}]
  %11 = xla_tuple %s9, %s10
  %s12 = sld [smem:[#allocation0]]
  $region81: #{tpu_custom_call.1} parent=0
    _
  %s14 = ssub.s32 1, %s12
  %s15 = scalar_select 0, %s14, %s12
  $region1: #{tpu_custom_call.1} parent=0
    #allocation2 [shape = 'u8[8192]{0}', space=vmem, size = 0x2000, scoped, tag = 'input window, operand 0']
    #allocation3 [shape = 's32[2]{0}', space=sflag, size = 0x8, scoped, tag = 'scoped memory for tpu_custom_call.1']
    #allocation4 [shape = 's32[2]{0}', space=sflag, size = 0x8, scoped, tag = 'scoped memory for tpu_custom_call.1']
    #allocation5 [shape = 'u8[8192]{0}', space=vmem, size = 0x2000, scoped, tag = 'output window, operand 0']
    #allocation6 [shape = 'u8[32768]{0}', space=vmem, size = 0x8000, scoped, tag = 'output window, operand 1']
    #allocation7 [shape = 's32[2]{0}', space=sflag, size = 0x8, scoped, tag = 'scoped memory for tpu_custom_call.1']
    %16 = vsyncpa [#allocation3], 0
    %s17 = scalar_lea.sflag [#allocation3], 1
    %18 = vsyncpa %s17, 0
    %19 = vsyncpa [#allocation4], 0
    %s20 = scalar_lea.sflag [#allocation4], 1
    %21 = vsyncpa %s20, 0
    %22 = vsyncpa [#allocation7], 0
    %s23 = scalar_lea.sflag [#allocation7], 1
    %24 = vsyncpa %s23, 0
    loop: start=0, step=1, limit=4
    $region2: #{tpu_custom_call.1} parent=1 // loop_pre_header
      _
    $region3: #{tpu_custom_call.1} parent=1 // loop_header
      %s26 = sphi 0, %s30
      %p27 = scmp.ge.s32.totalorder %s26, 4
      %s36 = sphi 0, %s38
      %s39 = sphi 0, %s36
      %s40 = sphi 0, %s39
      %s56 = sphi 0, %s40
      %s60 = sphi 0, %s60
      %s62 = sphi 0, %s60
      %s63 = sphi 0, %s62
      %s77 = sphi 0, %s63
      %s81 = sphi 0, %s81
      %s83 = sphi 0, %s81
      %s84 = sphi 0, %s83
      %s98 = sphi 0, %s84
      %s102 = sphi 0, %s102
      %s104 = sphi 0, %s102
      %s105 = sphi 0, %s104
      %s119 = sphi 0, %s105
      %s123 = sphi 0, %s123
      %s125 = sphi 0, %s123
      %s126 = sphi 0, %s125
      %s140 = sphi 0, %s126
      %s144 = sphi 0, %s144
      %s146 = sphi 0, %s144
      %s147 = sphi 0, %s146
      %s161 = sphi 0, %s147
      %s165 = sphi 0, %s165
      %s167 = sphi 0, %s165
      %s168 = sphi 0, %s167
      %s182 = sphi 0, %s168
      %s186 = sphi 0, %s186
      %s188 = sphi 0, %s186
      %s189 = sphi 0, %s188
      %s203 = sphi 0, %s189
      %s207 = sphi 0, %s207
      %s209 = sphi 0, %s207
      %s210 = sphi 0, %s209
      %s224 = sphi 0, %s210
      %s230 = sphi 0, %s232
      %s233 = sphi 0, %s230
      %s234 = sphi 0, %s233
      %s250 = sphi 0, %s234
      %s256 = sphi 0, %s258
      %s259 = sphi 0, %s256
      %s260 = sphi 0, %s259
      %s276 = sphi 0, %s260
    $region4: #{tpu_custom_call.1} parent=1 // loop_header_branch
      %29 = sbr.rel (%p27) target = $region8
    $region5: #{tpu_custom_call.1} parent=1 // loop_body
      %s31 = ssub.s32 %s26, 1
      %s32 = ssub.s32 %s26, 2
      %s33 = sadd.s32 %s26, 1
      %s34 = ssub.s32 %s26, %s33
      %p35 = scmp.eq.s32.totalorder %s34, 0
      %s37 = sadd.s32 %s36, 1
      %s38 = scalar_select %p35, %s36, %s37
      %p41 = pneg %p35
      %p42 = scmp.eq.s32.totalorder %s26, 1
      %p43 = por %p41, %p42
      %p44 = scmp.ne.s32.totalorder %s36, %s39
      %p45 = scmp.eq.s32.totalorder %s26, 0
      %p46 = por %p44, %p45
      %p47 = scmp.ne.s32.totalorder %s36, %s39
      %p48 = scmp.eq.s32.totalorder %s31, 1
      %p49 = por %p47, %p48
      %p50 = scmp.ne.s32.totalorder %s39, %s40
      %p51 = scmp.eq.s32.totalorder %s31, 0
      %p52 = por %p50, %p51
      %p53 = scmp.ne.s32.totalorder %s39, %s40
      %p54 = scmp.eq.s32.totalorder %s32, 1
      %p55 = por %p53, %p54
      %p57 = scmp.ne.s32.totalorder %s40, %s56
      %p58 = scmp.eq.s32.totalorder %s32, 0
      %p59 = por %p57, %p58
      %s61 = sadd.s32 %s60, 1
      %p64 = scmp.eq.s32.totalorder %s26, 1
      %p65 = scmp.ne.s32.totalorder %s60, %s62
      %p66 = scmp.eq.s32.totalorder %s26, 0
      %p67 = por %p65, %p66
      %p68 = scmp.ne.s32.totalorder %s60, %s62
      %p69 = scmp.eq.s32.totalorder %s31, 1
      %p70 = por %p68, %p69
      %p71 = scmp.ne.s32.totalorder %s62, %s63
      %p72 = scmp.eq.s32.totalorder %s31, 0
      %p73 = por %p71, %p72
      %p74 = scmp.ne.s32.totalorder %s62, %s63
      %p75 = scmp.eq.s32.totalorder %s32, 1
      %p76 = por %p74, %p75
      %p78 = scmp.ne.s32.totalorder %s63, %s77
      %p79 = scmp.eq.s32.totalorder %s32, 0
      %p80 = por %p78, %p79
      %s82 = sadd.s32 %s81, 1
      %p85 = scmp.eq.s32.totalorder %s26, 1
      %p86 = scmp.ne.s32.totalorder %s81, %s83
      %p87 = scmp.eq.s32.totalorder %s26, 0
      %p88 = por %p86, %p87
      %p89 = scmp.ne.s32.totalorder %s81, %s83
      %p90 = scmp.eq.s32.totalorder %s31, 1
      %p91 = por %p89, %p90
      %p92 = scmp.ne.s32.totalorder %s83, %s84
      %p93 = scmp.eq.s32.totalorder %s31, 0
      %p94 = por %p92, %p93
      %p95 = scmp.ne.s32.totalorder %s83, %s84
      %p96 = scmp.eq.s32.totalorder %s32, 1
      %p97 = por %p95, %p96
      %p99 = scmp.ne.s32.totalorder %s84, %s98
      %p100 = scmp.eq.s32.totalorder %s32, 0
      %p101 = por %p99, %p100
      %s103 = sadd.s32 %s102, 1
      %p106 = scmp.eq.s32.totalorder %s26, 1
      %p107 = scmp.ne.s32.totalorder %s102, %s104
      %p108 = scmp.eq.s32.totalorder %s26, 0
      %p109 = por %p107, %p108
      %p110 = scmp.ne.s32.totalorder %s102, %s104
      %p111 = scmp.eq.s32.totalorder %s31, 1
      %p112 = por %p110, %p111
      %p113 = scmp.ne.s32.totalorder %s104, %s105
      %p114 = scmp.eq.s32.totalorder %s31, 0
      %p115 = por %p113, %p114
      %p116 = scmp.ne.s32.totalorder %s104, %s105
      %p117 = scmp.eq.s32.totalorder %s32, 1
      %p118 = por %p116, %p117
      %p120 = scmp.ne.s32.totalorder %s105, %s119
      %p121 = scmp.eq.s32.totalorder %s32, 0
      %p122 = por %p120, %p121
      %s124 = sadd.s32 %s123, 1
      %p127 = scmp.eq.s32.totalorder %s26, 1
      %p128 = scmp.ne.s32.totalorder %s123, %s125
      %p129 = scmp.eq.s32.totalorder %s26, 0
      %p130 = por %p128, %p129
      %p131 = scmp.ne.s32.totalorder %s123, %s125
      %p132 = scmp.eq.s32.totalorder %s31, 1
      %p133 = por %p131, %p132
      %p134 = scmp.ne.s32.totalorder %s125, %s126
      %p135 = scmp.eq.s32.totalorder %s31, 0
      %p136 = por %p134, %p135
      %p137 = scmp.ne.s32.totalorder %s125, %s126
      %p138 = scmp.eq.s32.totalorder %s32, 1
      %p139 = por %p137, %p138
      %p141 = scmp.ne.s32.totalorder %s126, %s140
      %p142 = scmp.eq.s32.totalorder %s32, 0
      %p143 = por %p141, %p142
      %s145 = sadd.s32 %s144, 1
      %p148 = scmp.eq.s32.totalorder %s26, 1
      %p149 = scmp.ne.s32.totalorder %s144, %s146
      %p150 = scmp.eq.s32.totalorder %s26, 0
      %p151 = por %p149, %p150
      %p152 = scmp.ne.s32.totalorder %s144, %s146
      %p153 = scmp.eq.s32.totalorder %s31, 1
      %p154 = por %p152, %p153
      %p155 = scmp.ne.s32.totalorder %s146, %s147
      %p156 = scmp.eq.s32.totalorder %s31, 0
      %p157 = por %p155, %p156
      %p158 = scmp.ne.s32.totalorder %s146, %s147
      %p159 = scmp.eq.s32.totalorder %s32, 1
      %p160 = por %p158, %p159
      %p162 = scmp.ne.s32.totalorder %s147, %s161
      %p163 = scmp.eq.s32.totalorder %s32, 0
      %p164 = por %p162, %p163
      %s166 = sadd.s32 %s165, 1
      %p169 = scmp.eq.s32.totalorder %s26, 1
      %p170 = scmp.ne.s32.totalorder %s165, %s167
      %p171 = scmp.eq.s32.totalorder %s26, 0
      %p172 = por %p170, %p171
      %p173 = scmp.ne.s32.totalorder %s165, %s167
      %p174 = scmp.eq.s32.totalorder %s31, 1
      %p175 = por %p173, %p174
      %p176 = scmp.ne.s32.totalorder %s167, %s168
      %p177 = scmp.eq.s32.totalorder %s31, 0
      %p178 = por %p176, %p177
      %p179 = scmp.ne.s32.totalorder %s167, %s168
      %p180 = scmp.eq.s32.totalorder %s32, 1
      %p181 = por %p179, %p180
      %p183 = scmp.ne.s32.totalorder %s168, %s182
      %p184 = scmp.eq.s32.totalorder %s32, 0
      %p185 = por %p183, %p184
      %s187 = sadd.s32 %s186, 1
      %p190 = scmp.eq.s32.totalorder %s26, 1
      %p191 = scmp.ne.s32.totalorder %s186, %s188
      %p192 = scmp.eq.s32.totalorder %s26, 0
      %p193 = por %p191, %p192
      %p194 = scmp.ne.s32.totalorder %s186, %s188
      %p195 = scmp.eq.s32.totalorder %s31, 1
      %p196 = por %p194, %p195
      %p197 = scmp.ne.s32.totalorder %s188, %s189
      %p198 = scmp.eq.s32.totalorder %s31, 0
      %p199 = por %p197, %p198
      %p200 = scmp.ne.s32.totalorder %s188, %s189
      %p201 = scmp.eq.s32.totalorder %s32, 1
      %p202 = por %p200, %p201
      %p204 = scmp.ne.s32.totalorder %s189, %s203
      %p205 = scmp.eq.s32.totalorder %s32, 0
      %p206 = por %p204, %p205
      %s208 = sadd.s32 %s207, 1
      %p211 = scmp.eq.s32.totalorder %s26, 1
      %p212 = scmp.ne.s32.totalorder %s207, %s209
      %p213 = scmp.eq.s32.totalorder %s26, 0
      %p214 = por %p212, %p213
      %p215 = scmp.ne.s32.totalorder %s207, %s209
      %p216 = scmp.eq.s32.totalorder %s31, 1
      %p217 = por %p215, %p216
      %p218 = scmp.ne.s32.totalorder %s209, %s210
      %p219 = scmp.eq.s32.totalorder %s31, 0
      %p220 = por %p218, %p219
      %p221 = scmp.ne.s32.totalorder %s209, %s210
      %p222 = scmp.eq.s32.totalorder %s32, 1
      %p223 = por %p221, %p222
      %p225 = scmp.ne.s32.totalorder %s210, %s224
      %p226 = scmp.eq.s32.totalorder %s32, 0
      %p227 = por %p225, %p226
      %s228 = ssub.s32 %s26, %s33
      %p229 = scmp.eq.s32.totalorder %s228, 0
      %s231 = sadd.s32 %s230, 1
      %s232 = scalar_select %p229, %s230, %s231
      %p235 = pneg %p229
      %p236 = scmp.eq.s32.totalorder %s26, 1
      %p237 = por %p235, %p236
      %p238 = scmp.ne.s32.totalorder %s230, %s233
      %p239 = scmp.eq.s32.totalorder %s26, 0
      %p240 = por %p238, %p239
      %p241 = scmp.ne.s32.totalorder %s230, %s233
      %p242 = scmp.eq.s32.totalorder %s31, 1
      %p243 = por %p241, %p242
      %p244 = scmp.ne.s32.totalorder %s233, %s234
      %p245 = scmp.eq.s32.totalorder %s31, 0
      %p246 = por %p244, %p245
      %p247 = scmp.ne.s32.totalorder %s233, %s234
      %p248 = scmp.eq.s32.totalorder %s32, 1
      %p249 = por %p247, %p248
      %p251 = scmp.ne.s32.totalorder %s234, %s250
      %p252 = scmp.eq.s32.totalorder %s32, 0
      %p253 = por %p251, %p252
      %s254 = ssub.s32 %s26, %s33
      %p255 = scmp.eq.s32.totalorder %s254, 0
      %s257 = sadd.s32 %s256, 1
      %s258 = scalar_select %p255, %s256, %s257
      %p261 = pneg %p255
      %p262 = scmp.eq.s32.totalorder %s26, 1
      %p263 = por %p261, %p262
      %p264 = scmp.ne.s32.totalorder %s256, %s259
      %p265 = scmp.eq.s32.totalorder %s26, 0
      %p266 = por %p264, %p265
      %p267 = scmp.ne.s32.totalorder %s256, %s259
      %p268 = scmp.eq.s32.totalorder %s31, 1
      %p269 = por %p267, %p268
      %p270 = scmp.ne.s32.totalorder %s259, %s260
      %p271 = scmp.eq.s32.totalorder %s31, 0
      %p272 = por %p270, %p271
      %p273 = scmp.ne.s32.totalorder %s259, %s260
      %p274 = scmp.eq.s32.totalorder %s32, 1
      %p275 = por %p273, %p274
      %p277 = scmp.ne.s32.totalorder %s260, %s276
      %p278 = scmp.eq.s32.totalorder %s32, 0
      %p279 = por %p277, %p278
      %p280 = scmp.le.s32.totalorder 1, %s26
      %p281 = scmp.lt.s32.totalorder %s26, 3
      %p282 = pnand %p280, %p281
      %p283 = pneg %p282
      // Predicated region
      $region9: #{tpu_custom_call.1} parent=5 // pred_check
        _
      $region10: #{tpu_custom_call.1} parent=5 // pred_check_branch
        %285 = sbr.rel (%p282) target = $region12
      $region11: #{tpu_custom_call.1} parent=5 // pred_region
        %s286 = ssub.s32 %s26, 1
        // Predicated region
        $region13: #{tpu_custom_call.1} parent=11 // pred_check
          %p287 = pneg %p73
        $region14: #{tpu_custom_call.1} parent=11 // pred_check_branch
          %289 = sbr.rel (%p287) target = $region16
        $region15: #{tpu_custom_call.1} parent=11 // pred_region
          _
        $region16: #{tpu_custom_call.1} parent=11 // pred_fallthru
          _
        // Predicated region
        $region17: #{tpu_custom_call.1} parent=11 // pred_check
          %p290 = pneg %p94
        $region18: #{tpu_custom_call.1} parent=11 // pred_check_branch
          %292 = sbr.rel (%p290) target = $region20
        $region19: #{tpu_custom_call.1} parent=11 // pred_region
          _
        $region20: #{tpu_custom_call.1} parent=11 // pred_fallthru
          _
        // Predicated region
        $region21: #{tpu_custom_call.1} parent=11 // pred_check
          %p293 = pneg %p115
        $region22: #{tpu_custom_call.1} parent=11 // pred_check_branch
          %295 = sbr.rel (%p293) target = $region24
        $region23: #{tpu_custom_call.1} parent=11 // pred_region
          _
        $region24: #{tpu_custom_call.1} parent=11 // pred_fallthru
          _
        // Predicated region
        $region25: #{tpu_custom_call.1} parent=11 // pred_check
          %p296 = pneg %p136
        $region26: #{tpu_custom_call.1} parent=11 // pred_check_branch
          %298 = sbr.rel (%p296) target = $region28
        $region27: #{tpu_custom_call.1} parent=11 // pred_region
          _
        $region28: #{tpu_custom_call.1} parent=11 // pred_fallthru
          _
        // Predicated region
        $region29: #{tpu_custom_call.1} parent=11 // pred_check
          %p299 = pneg %p157
        $region30: #{tpu_custom_call.1} parent=11 // pred_check_branch
          %301 = sbr.rel (%p299) target = $region32
        $region31: #{tpu_custom_call.1} parent=11 // pred_region
          _
        $region32: #{tpu_custom_call.1} parent=11 // pred_fallthru
          _
        // Predicated region
        $region33: #{tpu_custom_call.1} parent=11 // pred_check
          %p302 = pneg %p178
        $region34: #{tpu_custom_call.1} parent=11 // pred_check_branch
          %304 = sbr.rel (%p302) target = $region36
        $region35: #{tpu_custom_call.1} parent=11 // pred_region
          _
        $region36: #{tpu_custom_call.1} parent=11 // pred_fallthru
          _
        // Predicated region
        $region37: #{tpu_custom_call.1} parent=11 // pred_check
          %p305 = pneg %p199
        $region38: #{tpu_custom_call.1} parent=11 // pred_check_branch
          %307 = sbr.rel (%p305) target = $region40
        $region39: #{tpu_custom_call.1} parent=11 // pred_region
          _
        $region40: #{tpu_custom_call.1} parent=11 // pred_fallthru
          _
        // Predicated region
        $region41: #{tpu_custom_call.1} parent=11 // pred_check
          %p308 = pneg %p220
        $region42: #{tpu_custom_call.1} parent=11 // pred_check_branch
          %310 = sbr.rel (%p308) target = $region44
        $region43: #{tpu_custom_call.1} parent=11 // pred_region
          _
        $region44: #{tpu_custom_call.1} parent=11 // pred_fallthru
          _
      $region12: #{tpu_custom_call.1} parent=5 // pred_fallthru
        _
      %p311 = scmp.lt.s32.totalorder %s26, 2
      // Predicated region
      $region45: #{tpu_custom_call.1} parent=5 // pred_check
        %p312 = pneg %p311
      $region46: #{tpu_custom_call.1} parent=5 // pred_check_branch
        %314 = sbr.rel (%p312) target = $region48
      $region47: #{tpu_custom_call.1} parent=5 // pred_region
        // Predicated region
        $region49: #{tpu_custom_call.1} parent=47 // pred_check
          %p315 = pneg %p46
        $region50: #{tpu_custom_call.1} parent=47 // pred_check_branch
          %317 = sbr.rel (%p315) target = $region52
        $region51: #{tpu_custom_call.1} parent=47 // pred_region
          %s318 = sand.u32 %s36, 1
          %s319 = scalar_lea.sflag [#allocation3], %s318
          %s320 = sand.u32 %s36, 1
          %s321 = smul.addr %s320, 8
          %s322 = scalar_lea.vmem [#allocation2], %s321
          %s324 = ssub.s32 128, 128
          %325 = vsyncadd %s319, %s324
          %s326 = smul.addr %s26, 128
          %s327 = scalar_lea.hbm %s0, %s326
          %s329 = sshll.u32 %s322, 4
          %s330 = int_to_ptr.vmem [resolvable:$true] %s329
          %332 = dma.hbm_to_vmem [thread:$0]  %s327, 128, %s330, %s319
        $region52: #{tpu_custom_call.1} parent=47 // pred_fallthru
          _
      $region48: #{tpu_custom_call.1} parent=5 // pred_fallthru
        _
      %p333 = scmp.le.s32.totalorder 1, %s26
      %p334 = scmp.lt.s32.totalorder %s26, 3
      %p335 = pnand %p333, %p334
      %p336 = pneg %p335
      // Predicated region
      $region53: #{tpu_custom_call.1} parent=5 // pred_check
        _
      $region54: #{tpu_custom_call.1} parent=5 // pred_check_branch
        %338 = sbr.rel (%p335) target = $region56
      $region55: #{tpu_custom_call.1} parent=5 // pred_region
        %s339 = ssub.s32 %s26, 1
        %s340 = sand.u32 %s39, 1
        %s341 = scalar_lea.sflag [#allocation3], %s340
        %s342 = sand.u32 %s39, 1
        %s343 = smul.addr %s342, 8
        %s344 = scalar_lea.vmem [#allocation2], %s343
        // Predicated region
        $region57: #{tpu_custom_call.1} parent=55 // pred_check
          %p345 = pneg %p52
        $region58: #{tpu_custom_call.1} parent=55 // pred_check_branch
          %347 = sbr.rel (%p345) target = $region60
        $region59: #{tpu_custom_call.1} parent=55 // pred_region
          %348 = dma.done %s341, 128
        $region60: #{tpu_custom_call.1} parent=55 // pred_fallthru
          _
        %s349 = sand.u32 %s39, 1
        %s350 = scalar_lea.sflag [#allocation3], %s349
        %s351 = sand.u32 %s39, 1
        %s352 = smul.addr %s351, 8
        %s353 = scalar_lea.vmem [#allocation2], %s352
        %p354 = pneg %p52
        %p355 = pneg %p49
        %p356 = pneg %p73
        %p357 = pneg %p70
        %p358 = pneg %p94
        %p359 = pneg %p91
        %p360 = pneg %p115
        %p361 = pneg %p112
        %p362 = pneg %p136
        %p363 = pneg %p133
        %p364 = pneg %p157
        %p365 = pneg %p154
        %p366 = pneg %p178
        %p367 = pneg %p175
        %p368 = pneg %p199
        %p369 = pneg %p196
        %p370 = pneg %p220
        %p371 = pneg %p217
        %p372 = pneg %p246
        %p373 = pneg %p243
        %s374 = sand.u32 %s233, 1
        %s375 = scalar_lea.sflag [#allocation4], %s374
        %s376 = sand.u32 %s233, 1
        %s377 = smul.addr %s376, 8
        %s378 = scalar_lea.vmem [#allocation5], %s377
        %p379 = pneg %p272
        %p380 = pneg %p269
        %s381 = sand.u32 %s259, 1
        %s382 = scalar_lea.sflag [#allocation7], %s381
        %s383 = sand.u32 %s259, 1
        %s384 = smul.addr %s383, 32
        %s385 = scalar_lea.vmem [#allocation6], %s384
        %v386 = vld [vmem:[%s344] sm:$0xff]
        %v387 = vld [vmem:[%s1] sm:$0xff]
        %v388 = vld [vmem:[%s1 + $0x8] sm:$0xff]
        %v389 = vld [vmem:[%s1 + $0x10] sm:$0xff]
        %v390 = vld [vmem:[%s1 + $0x18] sm:$0xff]
        %vm391 = vcmask 261120
        %v393 = vsel %vm391, %v386, 0
        %395 = vmatprep.subr.mxu0 0.0
        %396 = vmatpush1.msra.mxu0 %v387
        %397 = vmatprep.subr.mxu0 0.0
        %398 = vmatpush1.msra.mxu0 %v388
        %399 = vmatprep.subr.mxu0 0.0
        %400 = vmatpush1.msra.mxu0 %v389
        %401 = vmatprep.subr.mxu0 0.0
        %402 = vmatpush1.msra.mxu0 %v390
        %403 = vmatprep.subr.mxu0 0.0
        %404 = vmatpush1.msra.mxu0 0.0
        %405 = vmatprep.subr.mxu0 0.0
        %406 = vmatpush1.msra.mxu0 0.0
        %407 = vmatprep.subr.mxu0 0.0
        %408 = vmatpush1.msra.mxu0 0.0
        %409 = vmatprep.subr.mxu0 0.0
        %410 = vmatpush1.msra.mxu0 0.0
        %411 = vmatprep.subr.mxu0 0.0
        %412 = vmatpush1.msra.mxu0 0.0
        %413 = vmatprep.subr.mxu0 0.0
        %414 = vmatpush1.msra.mxu0 0.0
        %415 = vmatprep.subr.mxu0 0.0
        %416 = vmatpush1.msra.mxu0 0.0
        %417 = vmatprep.subr.mxu0 0.0
        %418 = vmatpush1.msra.mxu0 0.0
        %419 = vmatprep.subr.mxu0 0.0
        %420 = vmatpush1.msra.mxu0 0.0
        %421 = vmatprep.subr.mxu0 0.0
        %422 = vmatpush1.msra.mxu0 0.0
        %423 = vmatprep.subr.mxu0 0.0
        %424 = vmatpush1.msra.mxu0 0.0
        %425 = vmatprep.subr.mxu0 0.0
        %426 = vmatpush1.msra.mxu0 0.0
        %427 = vmatprep.subr.mxu0 0.0
        %428 = vmatpush1.msra.mxu0 0.0
        %429 = vmatprep.subr.mxu0 0.0
        %430 = vmatpush1.msra.mxu0 0.0
        %431 = vmatprep.subr.mxu0 0.0
        %432 = vmatpush1.msra.mxu0 0.0
        %433 = vmatprep.subr.mxu0 0.0
        %434 = vmatpush1.msra.mxu0 0.0
        %435 = vmatprep.subr.mxu0 0.0
        %436 = vmatpush1.msra.mxu0 0.0
        %437 = vmatprep.subr.mxu0 0.0
        %438 = vmatpush1.msra.mxu0 0.0
        %439 = vmatprep.subr.mxu0 0.0
        %440 = vmatpush1.msra.mxu0 0.0
        %441 = vmatprep.subr.mxu0 0.0
        %442 = vmatpush1.msra.mxu0 0.0
        %443 = vmatprep.subr.mxu0 0.0
        %444 = vmatpush1.msra.mxu0 0.0
        %445 = vmatprep.subr.mxu0 0.0
        %446 = vmatpush1.msra.mxu0 0.0
        %447 = vmatprep.subr.mxu0 0.0
        %448 = vmatpush1.msra.mxu0 0.0
        %449 = vmatprep.subr.mxu0 0.0
        %450 = vmatpush1.msra.mxu0 0.0
        %451 = vmatprep.subr.mxu0 0.0
        %452 = vmatpush1.msra.mxu0 0.0
        %453 = vmatprep.subr.mxu0 0.0
        %454 = vmatpush1.msra.mxu0 0.0
        %455 = vmatprep.subr.mxu0 0.0
        %456 = vmatpush1.msra.mxu0 0.0
        %457 = vmatprep.subr.mxu0 0.0
        %458 = vmatpush1.msra.mxu0 0.0
        %459 = vmatprep.mubr.f32.mxu0 0.0
        %460 = vmatmul.mubr.f32.gmra.mrb[0].mxu0 %v393
        %v461 = vpop.f32.mrb[0].mxu0
        %v462 = vadd.f32 0.0, %v461
        %v463 = vpop.f32.mrb[0].mxu0
        %464 = vdwg.mxu0
        %466 = vrot.lane.b32.xlu0 %v462, 96
        %v467 = vpop.permute.xlu0 %466
        %vm468 = vcmask 64512
        %v469 = vsel %vm468, %v462, 0
        %v471 = vsel %vm468, %v467, 0
        %473 = vmatprep.subr.mxu0 0.0
        %474 = vmatpush1.xpose.msra.mxu0 %v471
        %475 = vmatprep.subr.mxu0 0.0
        %476 = vmatpush1.xpose.msra.mxu0 0.0
        %477 = vmatprep.subr.mxu0 0.0
        %478 = vmatpush1.xpose.msra.mxu0 0.0
        %479 = vmatprep.subr.mxu0 0.0
        %480 = vmatpush1.xpose.msra.mxu0 0.0
        %481 = vmatprep.subr.mxu0 0.0
        %482 = vmatpush1.xpose.msra.mxu0 0.0
        %483 = vmatprep.subr.mxu0 0.0
        %484 = vmatpush1.xpose.msra.mxu0 0.0
        %485 = vmatprep.subr.mxu0 0.0
        %486 = vmatpush1.xpose.msra.mxu0 0.0
        %487 = vmatprep.subr.mxu0 0.0
        %488 = vmatpush1.xpose.msra.mxu0 0.0
        %489 = vmatprep.subr.mxu0 0.0
        %490 = vmatpush1.xpose.msra.mxu0 0.0
        %491 = vmatprep.subr.mxu0 0.0
        %492 = vmatpush1.xpose.msra.mxu0 0.0
        %493 = vmatprep.subr.mxu0 0.0
        %494 = vmatpush1.xpose.msra.mxu0 0.0
        %495 = vmatprep.subr.mxu0 0.0
        %496 = vmatpush1.xpose.msra.mxu0 0.0
        %497 = vmatprep.subr.mxu0 0.0
        %498 = vmatpush1.xpose.msra.mxu0 0.0
        %499 = vmatprep.subr.mxu0 0.0
        %500 = vmatpush1.xpose.msra.mxu0 0.0
        %501 = vmatprep.subr.mxu0 0.0
        %502 = vmatpush1.xpose.msra.mxu0 0.0
        %503 = vmatprep.subr.mxu0 0.0
        %504 = vmatpush1.xpose.msra.mxu0 0.0
        %505 = vmatprep.subr.mxu0 0.0
        %506 = vmatpush1.xpose.msra.mxu0 0.0
        %507 = vmatprep.subr.mxu0 0.0
        %508 = vmatpush1.xpose.msra.mxu0 0.0
        %509 = vmatprep.subr.mxu0 0.0
        %510 = vmatpush1.xpose.msra.mxu0 0.0
        %511 = vmatprep.subr.mxu0 0.0
        %512 = vmatpush1.xpose.msra.mxu0 0.0
        %513 = vmatprep.subr.mxu0 0.0
        %514 = vmatpush1.xpose.msra.mxu0 0.0
        %515 = vmatprep.subr.mxu0 0.0
        %516 = vmatpush1.xpose.msra.mxu0 0.0
        %517 = vmatprep.subr.mxu0 0.0
        %518 = vmatpush1.xpose.msra.mxu0 0.0
        %519 = vmatprep.subr.mxu0 0.0
        %520 = vmatpush1.xpose.msra.mxu0 0.0
        %521 = vmatprep.subr.mxu0 0.0
        %522 = vmatpush1.xpose.msra.mxu0 0.0
        %523 = vmatprep.subr.mxu0 0.0
        %524 = vmatpush1.xpose.msra.mxu0 0.0
        %525 = vmatprep.subr.mxu0 0.0
        %526 = vmatpush1.xpose.msra.mxu0 0.0
        %527 = vmatprep.subr.mxu0 0.0
        %528 = vmatpush1.xpose.msra.mxu0 0.0
        %529 = vmatprep.subr.mxu0 0.0
        %530 = vmatpush1.xpose.msra.mxu0 0.0
        %531 = vmatprep.subr.mxu0 0.0
        %532 = vmatpush1.xpose.msra.mxu0 0.0
        %533 = vmatprep.subr.mxu0 0.0
        %534 = vmatpush1.xpose.msra.mxu0 0.0
        %535 = vmatprep.subr.mxu0 0.0
        %536 = vmatpush1.xpose.msra.mxu0 0.0
        %537 = vmatprep.mubr.f32.mxu0 0.0
        %538 = vmatmul.mubr.f32.gmra.mrb[0].mxu0 %v469
        %v539 = vpop.f32.mrb[0].mxu0
        %v540 = vadd.f32 0.0, %v539
        %v541 = vpop.f32.mrb[0].mxu0
        %542 = vdwg.mxu0
        %v543 = vmul.f32 %v540, 0.35355338
        %v544 = vsel %vm468, %v543, -inf
        %545 = vmax.xlane.f32.xlu0 %v544
        %v546 = vpop.xlane.xlu0 %545
        %v547 = vsub.f32 %v543, %v546
        %v548 = vmul.f32 %v547, 1.442695
        %v549 = vpow.pop %v548
        %v550 = vsel %vm468, %v549, 0.0
        %551 = vadd.xlane.f32.xlu0 %v550
        %v552 = vpop.xlane.xlu0 %551
        %v553 = vrcp.pop %v552
        %v554 = vmul.f32 %v549, %v553
        %555 = vst.msk [vmem:[%s385] sm:$0xff] %vm468, %v554
        %556 = vrot.lane.b32.xlu0 %v462, 64
        %v557 = vpop.permute.xlu0 %556
        %v560 = vsel %vm468, %v554, 0
        %562 = vmatprep.subr.mxu0 0.0
        %563 = vmatpush1.msra.mxu0 %v557
        %564 = vmatprep.subr.mxu0 0.0
        %565 = vmatpush1.msra.mxu0 0.0
        %566 = vmatprep.subr.mxu0 0.0
        %567 = vmatpush1.msra.mxu0 0.0
        %568 = vmatprep.subr.mxu0 0.0
        %569 = vmatpush1.msra.mxu0 0.0
        %570 = vmatprep.subr.mxu0 0.0
        %571 = vmatpush1.msra.mxu0 0.0
        %572 = vmatprep.subr.mxu0 0.0
        %573 = vmatpush1.msra.mxu0 0.0
        %574 = vmatprep.subr.mxu0 0.0
        %575 = vmatpush1.msra.mxu0 0.0
        %576 = vmatprep.subr.mxu0 0.0
        %577 = vmatpush1.msra.mxu0 0.0
        %578 = vmatprep.subr.mxu0 0.0
        %579 = vmatpush1.msra.mxu0 0.0
        %580 = vmatprep.subr.mxu0 0.0
        %581 = vmatpush1.msra.mxu0 0.0
        %582 = vmatprep.subr.mxu0 0.0
        %583 = vmatpush1.msra.mxu0 0.0
        %584 = vmatprep.subr.mxu0 0.0
        %585 = vmatpush1.msra.mxu0 0.0
        %586 = vmatprep.subr.mxu0 0.0
        %587 = vmatpush1.msra.mxu0 0.0
        %588 = vmatprep.subr.mxu0 0.0
        %589 = vmatpush1.msra.mxu0 0.0
        %590 = vmatprep.subr.mxu0 0.0
        %591 = vmatpush1.msra.mxu0 0.0
        %592 = vmatprep.subr.mxu0 0.0
        %593 = vmatpush1.msra.mxu0 0.0
        %594 = vmatprep.subr.mxu0 0.0
        %595 = vmatpush1.msra.mxu0 0.0
        %596 = vmatprep.subr.mxu0 0.0
        %597 = vmatpush1.msra.mxu0 0.0
        %598 = vmatprep.subr.mxu0 0.0
        %599 = vmatpush1.msra.mxu0 0.0
        %600 = vmatprep.subr.mxu0 0.0
        %601 = vmatpush1.msra.mxu0 0.0
        %602 = vmatprep.subr.mxu0 0.0
        %603 = vmatpush1.msra.mxu0 0.0
        %604 = vmatprep.subr.mxu0 0.0
        %605 = vmatpush1.msra.mxu0 0.0
        %606 = vmatprep.subr.mxu0 0.0
        %607 = vmatpush1.msra.mxu0 0.0
        %608 = vmatprep.subr.mxu0 0.0
        %609 = vmatpush1.msra.mxu0 0.0
        %610 = vmatprep.subr.mxu0 0.0
        %611 = vmatpush1.msra.mxu0 0.0
        %612 = vmatprep.subr.mxu0 0.0
        %613 = vmatpush1.msra.mxu0 0.0
        %614 = vmatprep.subr.mxu0 0.0
        %615 = vmatpush1.msra.mxu0 0.0
        %616 = vmatprep.subr.mxu0 0.0
        %617 = vmatpush1.msra.mxu0 0.0
        %618 = vmatprep.subr.mxu0 0.0
        %619 = vmatpush1.msra.mxu0 0.0
        %620 = vmatprep.subr.mxu0 0.0
        %621 = vmatpush1.msra.mxu0 0.0
        %622 = vmatprep.subr.mxu0 0.0
        %623 = vmatpush1.msra.mxu0 0.0
        %624 = vmatprep.subr.mxu0 0.0
        %625 = vmatpush1.msra.mxu0 0.0
        %626 = vmatprep.mubr.f32.mxu0 0.0
        %627 = vmatmul.mubr.f32.gmra.mrb[0].mxu0 %v560
        %v628 = vpop.f32.mrb[0].mxu0
        %v629 = vadd.f32 0.0, %v628
        %v630 = vpop.f32.mrb[0].mxu0
        %631 = vdwg.mxu0
        %632 = vrot.lane.b32.xlu0 %v462, 120
        %v633 = vpop.permute.xlu0 %632
        %634 = vrot.lane.b32.xlu0 %v462, 88
        %v635 = vpop.permute.xlu0 %634
        %v636 = vsel %vm468, %v633, 0
        %v638 = vsel %vm468, %v635, 0
        %640 = vmatprep.subr.mxu0 0.0
        %641 = vmatpush1.xpose.msra.mxu0 %v638
        %642 = vmatprep.subr.mxu0 0.0
        %643 = vmatpush1.xpose.msra.mxu0 0.0
        %644 = vmatprep.subr.mxu0 0.0
        %645 = vmatpush1.xpose.msra.mxu0 0.0
        %646 = vmatprep.subr.mxu0 0.0
        %647 = vmatpush1.xpose.msra.mxu0 0.0
        %648 = vmatprep.subr.mxu0 0.0
        %649 = vmatpush1.xpose.msra.mxu0 0.0
        %650 = vmatprep.subr.mxu0 0.0
        %651 = vmatpush1.xpose.msra.mxu0 0.0
        %652 = vmatprep.subr.mxu0 0.0
        %653 = vmatpush1.xpose.msra.mxu0 0.0
        %654 = vmatprep.subr.mxu0 0.0
        %655 = vmatpush1.xpose.msra.mxu0 0.0
        %656 = vmatprep.subr.mxu0 0.0
        %657 = vmatpush1.xpose.msra.mxu0 0.0
        %658 = vmatprep.subr.mxu0 0.0
        %659 = vmatpush1.xpose.msra.mxu0 0.0
        %660 = vmatprep.subr.mxu0 0.0
        %661 = vmatpush1.xpose.msra.mxu0 0.0
        %662 = vmatprep.subr.mxu0 0.0
        %663 = vmatpush1.xpose.msra.mxu0 0.0
        %664 = vmatprep.subr.mxu0 0.0
        %665 = vmatpush1.xpose.msra.mxu0 0.0
        %666 = vmatprep.subr.mxu0 0.0
        %667 = vmatpush1.xpose.msra.mxu0 0.0
        %668 = vmatprep.subr.mxu0 0.0
        %669 = vmatpush1.xpose.msra.mxu0 0.0
        %670 = vmatprep.subr.mxu0 0.0
        %671 = vmatpush1.xpose.msra.mxu0 0.0
        %672 = vmatprep.subr.mxu0 0.0
        %673 = vmatpush1.xpose.msra.mxu0 0.0
        %674 = vmatprep.subr.mxu0 0.0
        %675 = vmatpush1.xpose.msra.mxu0 0.0
        %676 = vmatprep.subr.mxu0 0.0
        %677 = vmatpush1.xpose.msra.mxu0 0.0
        %678 = vmatprep.subr.mxu0 0.0
        %679 = vmatpush1.xpose.msra.mxu0 0.0
        %680 = vmatprep.subr.mxu0 0.0
        %681 = vmatpush1.xpose.msra.mxu0 0.0
        %682 = vmatprep.subr.mxu0 0.0
        %683 = vmatpush1.xpose.msra.mxu0 0.0
        %684 = vmatprep.subr.mxu0 0.0
        %685 = vmatpush1.xpose.msra.mxu0 0.0
        %686 = vmatprep.subr.mxu0 0.0
        %687 = vmatpush1.xpose.msra.mxu0 0.0
        %688 = vmatprep.subr.mxu0 0.0
        %689 = vmatpush1.xpose.msra.mxu0 0.0
        %690 = vmatprep.subr.mxu0 0.0
        %691 = vmatpush1.xpose.msra.mxu0 0.0
        %692 = vmatprep.subr.mxu0 0.0
        %693 = vmatpush1.xpose.msra.mxu0 0.0
        %694 = vmatprep.subr.mxu0 0.0
        %695 = vmatpush1.xpose.msra.mxu0 0.0
        %696 = vmatprep.subr.mxu0 0.0
        %697 = vmatpush1.xpose.msra.mxu0 0.0
        %698 = vmatprep.subr.mxu0 0.0
        %699 = vmatpush1.xpose.msra.mxu0 0.0
        %700 = vmatprep.subr.mxu0 0.0
        %701 = vmatpush1.xpose.msra.mxu0 0.0
        %702 = vmatprep.subr.mxu0 0.0
        %703 = vmatpush1.xpose.msra.mxu0 0.0
        %704 = vmatprep.mubr.f32.mxu0 0.0
        %705 = vmatmul.mubr.f32.gmra.mrb[0].mxu0 %v636
        %v706 = vpop.f32.mrb[0].mxu0
        %v707 = vadd.f32 0.0, %v706
        %v708 = vpop.f32.mrb[0].mxu0
        %709 = vdwg.mxu0
        %v710 = vmul.f32 %v707, 0.35355338
        %v711 = vsel %vm468, %v710, -inf
        %712 = vmax.xlane.f32.xlu0 %v711
        %v713 = vpop.xlane.xlu0 %712
        %v714 = vsub.f32 %v710, %v713
        %v715 = vmul.f32 %v714, 1.442695
        %v716 = vpow.pop %v715
        %v717 = vsel %vm468, %v716, 0.0
        %718 = vadd.xlane.f32.xlu0 %v717
        %v719 = vpop.xlane.xlu0 %718
        %v720 = vrcp.pop %v719
        %v721 = vmul.f32 %v716, %v720
        %s722 = scalar_lea.vmem %s385, 8 [#allocation6]
        %723 = vst.msk [vmem:[%s722] sm:$0xff] %vm468, %v721
        %724 = vrot.lane.b32.xlu0 %v462, 56
        %v725 = vpop.permute.xlu0 %724
        %v728 = vsel %vm468, %v721, 0
        %730 = vmatprep.subr.mxu0 0.0
        %731 = vmatpush1.msra.mxu0 %v725
        %732 = vmatprep.subr.mxu0 0.0
        %733 = vmatpush1.msra.mxu0 0.0
        %734 = vmatprep.subr.mxu0 0.0
        %735 = vmatpush1.msra.mxu0 0.0
        %736 = vmatprep.subr.mxu0 0.0
        %737 = vmatpush1.msra.mxu0 0.0
        %738 = vmatprep.subr.mxu0 0.0
        %739 = vmatpush1.msra.mxu0 0.0
        %740 = vmatprep.subr.mxu0 0.0
        %741 = vmatpush1.msra.mxu0 0.0
        %742 = vmatprep.subr.mxu0 0.0
        %743 = vmatpush1.msra.mxu0 0.0
        %744 = vmatprep.subr.mxu0 0.0
        %745 = vmatpush1.msra.mxu0 0.0
        %746 = vmatprep.subr.mxu0 0.0
        %747 = vmatpush1.msra.mxu0 0.0
        %748 = vmatprep.subr.mxu0 0.0
        %749 = vmatpush1.msra.mxu0 0.0
        %750 = vmatprep.subr.mxu0 0.0
        %751 = vmatpush1.msra.mxu0 0.0
        %752 = vmatprep.subr.mxu0 0.0
        %753 = vmatpush1.msra.mxu0 0.0
        %754 = vmatprep.subr.mxu0 0.0
        %755 = vmatpush1.msra.mxu0 0.0
        %756 = vmatprep.subr.mxu0 0.0
        %757 = vmatpush1.msra.mxu0 0.0
        %758 = vmatprep.subr.mxu0 0.0
        %759 = vmatpush1.msra.mxu0 0.0
        %760 = vmatprep.subr.mxu0 0.0
        %761 = vmatpush1.msra.mxu0 0.0
        %762 = vmatprep.subr.mxu0 0.0
        %763 = vmatpush1.msra.mxu0 0.0
        %764 = vmatprep.subr.mxu0 0.0
        %765 = vmatpush1.msra.mxu0 0.0
        %766 = vmatprep.subr.mxu0 0.0
        %767 = vmatpush1.msra.mxu0 0.0
        %768 = vmatprep.subr.mxu0 0.0
        %769 = vmatpush1.msra.mxu0 0.0
        %770 = vmatprep.subr.mxu0 0.0
        %771 = vmatpush1.msra.mxu0 0.0
        %772 = vmatprep.subr.mxu0 0.0
        %773 = vmatpush1.msra.mxu0 0.0
        %774 = vmatprep.subr.mxu0 0.0
        %775 = vmatpush1.msra.mxu0 0.0
        %776 = vmatprep.subr.mxu0 0.0
        %777 = vmatpush1.msra.mxu0 0.0
        %778 = vmatprep.subr.mxu0 0.0
        %779 = vmatpush1.msra.mxu0 0.0
        %780 = vmatprep.subr.mxu0 0.0
        %781 = vmatpush1.msra.mxu0 0.0
        %782 = vmatprep.subr.mxu0 0.0
        %783 = vmatpush1.msra.mxu0 0.0
        %784 = vmatprep.subr.mxu0 0.0
        %785 = vmatpush1.msra.mxu0 0.0
        %786 = vmatprep.subr.mxu0 0.0
        %787 = vmatpush1.msra.mxu0 0.0
        %788 = vmatprep.subr.mxu0 0.0
        %789 = vmatpush1.msra.mxu0 0.0
        %790 = vmatprep.subr.mxu0 0.0
        %791 = vmatpush1.msra.mxu0 0.0
        %792 = vmatprep.subr.mxu0 0.0
        %793 = vmatpush1.msra.mxu0 0.0
        %794 = vmatprep.mubr.f32.mxu0 0.0
        %795 = vmatmul.mubr.f32.gmra.mrb[0].mxu0 %v728
        %v796 = vpop.f32.mrb[0].mxu0
        %v797 = vadd.f32 0.0, %v796
        %v798 = vpop.f32.mrb[0].mxu0
        %799 = vdwg.mxu0
        %800 = vrot.lane.b32.xlu0 %v462, 112
        %v801 = vpop.permute.xlu0 %800
        %802 = vrot.lane.b32.xlu0 %v462, 80
        %v803 = vpop.permute.xlu0 %802
        %v804 = vsel %vm468, %v801, 0
        %v806 = vsel %vm468, %v803, 0
        %808 = vmatprep.subr.mxu0 0.0
        %809 = vmatpush1.xpose.msra.mxu0 %v806
        %810 = vmatprep.subr.mxu0 0.0
        %811 = vmatpush1.xpose.msra.mxu0 0.0
        %812 = vmatprep.subr.mxu0 0.0
        %813 = vmatpush1.xpose.msra.mxu0 0.0
        %814 = vmatprep.subr.mxu0 0.0
        %815 = vmatpush1.xpose.msra.mxu0 0.0
        %816 = vmatprep.subr.mxu0 0.0
        %817 = vmatpush1.xpose.msra.mxu0 0.0
        %818 = vmatprep.subr.mxu0 0.0
        %819 = vmatpush1.xpose.msra.mxu0 0.0
        %820 = vmatprep.subr.mxu0 0.0
        %821 = vmatpush1.xpose.msra.mxu0 0.0
        %822 = vmatprep.subr.mxu0 0.0
        %823 = vmatpush1.xpose.msra.mxu0 0.0
        %824 = vmatprep.subr.mxu0 0.0
        %825 = vmatpush1.xpose.msra.mxu0 0.0
        %826 = vmatprep.subr.mxu0 0.0
        %827 = vmatpush1.xpose.msra.mxu0 0.0
        %828 = vmatprep.subr.mxu0 0.0
        %829 = vmatpush1.xpose.msra.mxu0 0.0
        %830 = vmatprep.subr.mxu0 0.0
        %831 = vmatpush1.xpose.msra.mxu0 0.0
        %832 = vmatprep.subr.mxu0 0.0
        %833 = vmatpush1.xpose.msra.mxu0 0.0
        %834 = vmatprep.subr.mxu0 0.0
        %835 = vmatpush1.xpose.msra.mxu0 0.0
        %836 = vmatprep.subr.mxu0 0.0
        %837 = vmatpush1.xpose.msra.mxu0 0.0
        %838 = vmatprep.subr.mxu0 0.0
        %839 = vmatpush1.xpose.msra.mxu0 0.0
        %840 = vmatprep.subr.mxu0 0.0
        %841 = vmatpush1.xpose.msra.mxu0 0.0
        %842 = vmatprep.subr.mxu0 0.0
        %843 = vmatpush1.xpose.msra.mxu0 0.0
        %844 = vmatprep.subr.mxu0 0.0
        %845 = vmatpush1.xpose.msra.mxu0 0.0
        %846 = vmatprep.subr.mxu0 0.0
        %847 = vmatpush1.xpose.msra.mxu0 0.0
        %848 = vmatprep.subr.mxu0 0.0
        %849 = vmatpush1.xpose.msra.mxu0 0.0
        %850 = vmatprep.subr.mxu0 0.0
        %851 = vmatpush1.xpose.msra.mxu0 0.0
        %852 = vmatprep.subr.mxu0 0.0
        %853 = vmatpush1.xpose.msra.mxu0 0.0
        %854 = vmatprep.subr.mxu0 0.0
        %855 = vmatpush1.xpose.msra.mxu0 0.0
        %856 = vmatprep.subr.mxu0 0.0
        %857 = vmatpush1.xpose.msra.mxu0 0.0
        %858 = vmatprep.subr.mxu0 0.0
        %859 = vmatpush1.xpose.msra.mxu0 0.0
        %860 = vmatprep.subr.mxu0 0.0
        %861 = vmatpush1.xpose.msra.mxu0 0.0
        %862 = vmatprep.subr.mxu0 0.0
        %863 = vmatpush1.xpose.msra.mxu0 0.0
        %864 = vmatprep.subr.mxu0 0.0
        %865 = vmatpush1.xpose.msra.mxu0 0.0
        %866 = vmatprep.subr.mxu0 0.0
        %867 = vmatpush1.xpose.msra.mxu0 0.0
        %868 = vmatprep.subr.mxu0 0.0
        %869 = vmatpush1.xpose.msra.mxu0 0.0
        %870 = vmatprep.subr.mxu0 0.0
        %871 = vmatpush1.xpose.msra.mxu0 0.0
        %872 = vmatprep.mubr.f32.mxu0 0.0
        %873 = vmatmul.mubr.f32.gmra.mrb[0].mxu0 %v804
        %v874 = vpop.f32.mrb[0].mxu0
        %v875 = vadd.f32 0.0, %v874
        %v876 = vpop.f32.mrb[0].mxu0
        %877 = vdwg.mxu0
        %v878 = vmul.f32 %v875, 0.35355338
        %v879 = vsel %vm468, %v878, -inf
        %880 = vmax.xlane.f32.xlu0 %v879
        %v881 = vpop.xlane.xlu0 %880
        %v882 = vsub.f32 %v878, %v881
        %v883 = vmul.f32 %v882, 1.442695
        %v884 = vpow.pop %v883
        %v885 = vsel %vm468, %v884, 0.0
        %886 = vadd.xlane.f32.xlu0 %v885
        %v887 = vpop.xlane.xlu0 %886
        %v888 = vrcp.pop %v887
        %v889 = vmul.f32 %v884, %v888
        %s890 = scalar_lea.vmem %s385, 16 [#allocation6]
        %891 = vst.msk [vmem:[%s890] sm:$0xff] %vm468, %v889
        %892 = vrot.lane.b32.xlu0 %v462, 48
        %v893 = vpop.permute.xlu0 %892
        %v896 = vsel %vm468, %v889, 0
        %898 = vmatprep.subr.mxu0 0.0
        %899 = vmatpush1.msra.mxu0 %v893
        %900 = vmatprep.subr.mxu0 0.0
        %901 = vmatpush1.msra.mxu0 0.0
        %902 = vmatprep.subr.mxu0 0.0
        %903 = vmatpush1.msra.mxu0 0.0
        %904 = vmatprep.subr.mxu0 0.0
        %905 = vmatpush1.msra.mxu0 0.0
        %906 = vmatprep.subr.mxu0 0.0
        %907 = vmatpush1.msra.mxu0 0.0
        %908 = vmatprep.subr.mxu0 0.0
        %909 = vmatpush1.msra.mxu0 0.0
        %910 = vmatprep.subr.mxu0 0.0
        %911 = vmatpush1.msra.mxu0 0.0
        %912 = vmatprep.subr.mxu0 0.0
        %913 = vmatpush1.msra.mxu0 0.0
        %914 = vmatprep.subr.mxu0 0.0
        %915 = vmatpush1.msra.mxu0 0.0
        %916 = vmatprep.subr.mxu0 0.0
        %917 = vmatpush1.msra.mxu0 0.0
        %918 = vmatprep.subr.mxu0 0.0
        %919 = vmatpush1.msra.mxu0 0.0
        %920 = vmatprep.subr.mxu0 0.0
        %921 = vmatpush1.msra.mxu0 0.0
        %922 = vmatprep.subr.mxu0 0.0
        %923 = vmatpush1.msra.mxu0 0.0
        %924 = vmatprep.subr.mxu0 0.0
        %925 = vmatpush1.msra.mxu0 0.0
        %926 = vmatprep.subr.mxu0 0.0
        %927 = vmatpush1.msra.mxu0 0.0
        %928 = vmatprep.subr.mxu0 0.0
        %929 = vmatpush1.msra.mxu0 0.0
        %930 = vmatprep.subr.mxu0 0.0
        %931 = vmatpush1.msra.mxu0 0.0
        %932 = vmatprep.subr.mxu0 0.0
        %933 = vmatpush1.msra.mxu0 0.0
        %934 = vmatprep.subr.mxu0 0.0
        %935 = vmatpush1.msra.mxu0 0.0
        %936 = vmatprep.subr.mxu0 0.0
        %937 = vmatpush1.msra.mxu0 0.0
        %938 = vmatprep.subr.mxu0 0.0
        %939 = vmatpush1.msra.mxu0 0.0
        %940 = vmatprep.subr.mxu0 0.0
        %941 = vmatpush1.msra.mxu0 0.0
        %942 = vmatprep.subr.mxu0 0.0
        %943 = vmatpush1.msra.mxu0 0.0
        %944 = vmatprep.subr.mxu0 0.0
        %945 = vmatpush1.msra.mxu0 0.0
        %946 = vmatprep.subr.mxu0 0.0
        %947 = vmatpush1.msra.mxu0 0.0
        %948 = vmatprep.subr.mxu0 0.0
        %949 = vmatpush1.msra.mxu0 0.0
        %950 = vmatprep.subr.mxu0 0.0
        %951 = vmatpush1.msra.mxu0 0.0
        %952 = vmatprep.subr.mxu0 0.0
        %953 = vmatpush1.msra.mxu0 0.0
        %954 = vmatprep.subr.mxu0 0.0
        %955 = vmatpush1.msra.mxu0 0.0
        %956 = vmatprep.subr.mxu0 0.0
        %957 = vmatpush1.msra.mxu0 0.0
        %958 = vmatprep.subr.mxu0 0.0
        %959 = vmatpush1.msra.mxu0 0.0
        %960 = vmatprep.subr.mxu0 0.0
        %961 = vmatpush1.msra.mxu0 0.0
        %962 = vmatprep.mubr.f32.mxu0 0.0
        %963 = vmatmul.mubr.f32.gmra.mrb[0].mxu0 %v896
        %v964 = vpop.f32.mrb[0].mxu0
        %v965 = vadd.f32 0.0, %v964
        %v966 = vpop.f32.mrb[0].mxu0
        %967 = vdwg.mxu0
        %968 = vrot.lane.b32.xlu0 %v462, 104
        %v969 = vpop.permute.xlu0 %968
        %970 = vrot.lane.b32.xlu0 %v462, 72
        %v971 = vpop.permute.xlu0 %970
        %v972 = vsel %vm468, %v969, 0
        %v974 = vsel %vm468, %v971, 0
        %976 = vmatprep.subr.mxu0 0.0
        %977 = vmatpush1.xpose.msra.mxu0 %v974
        %978 = vmatprep.subr.mxu0 0.0
        %979 = vmatpush1.xpose.msra.mxu0 0.0
        %980 = vmatprep.subr.mxu0 0.0
        %981 = vmatpush1.xpose.msra.mxu0 0.0
        %982 = vmatprep.subr.mxu0 0.0
        %983 = vmatpush1.xpose.msra.mxu0 0.0
        %984 = vmatprep.subr.mxu0 0.0
        %985 = vmatpush1.xpose.msra.mxu0 0.0
        %986 = vmatprep.subr.mxu0 0.0
        %987 = vmatpush1.xpose.msra.mxu0 0.0
        %988 = vmatprep.subr.mxu0 0.0
        %989 = vmatpush1.xpose.msra.mxu0 0.0
        %990 = vmatprep.subr.mxu0 0.0
        %991 = vmatpush1.xpose.msra.mxu0 0.0
        %992 = vmatprep.subr.mxu0 0.0
        %993 = vmatpush1.xpose.msra.mxu0 0.0
        %994 = vmatprep.subr.mxu0 0.0
        %995 = vmatpush1.xpose.msra.mxu0 0.0
        %996 = vmatprep.subr.mxu0 0.0
        %997 = vmatpush1.xpose.msra.mxu0 0.0
        %998 = vmatprep.subr.mxu0 0.0
        %999 = vmatpush1.xpose.msra.mxu0 0.0
        %1000 = vmatprep.subr.mxu0 0.0
        %1001 = vmatpush1.xpose.msra.mxu0 0.0
        %1002 = vmatprep.subr.mxu0 0.0
        %1003 = vmatpush1.xpose.msra.mxu0 0.0
        %1004 = vmatprep.subr.mxu0 0.0
        %1005 = vmatpush1.xpose.msra.mxu0 0.0
        %1006 = vmatprep.subr.mxu0 0.0
        %1007 = vmatpush1.xpose.msra.mxu0 0.0
        %1008 = vmatprep.subr.mxu0 0.0
        %1009 = vmatpush1.xpose.msra.mxu0 0.0
        %1010 = vmatprep.subr.mxu0 0.0
        %1011 = vmatpush1.xpose.msra.mxu0 0.0
        %1012 = vmatprep.subr.mxu0 0.0
        %1013 = vmatpush1.xpose.msra.mxu0 0.0
        %1014 = vmatprep.subr.mxu0 0.0
        %1015 = vmatpush1.xpose.msra.mxu0 0.0
        %1016 = vmatprep.subr.mxu0 0.0
        %1017 = vmatpush1.xpose.msra.mxu0 0.0
        %1018 = vmatprep.subr.mxu0 0.0
        %1019 = vmatpush1.xpose.msra.mxu0 0.0
        %1020 = vmatprep.subr.mxu0 0.0
        %1021 = vmatpush1.xpose.msra.mxu0 0.0
        %1022 = vmatprep.subr.mxu0 0.0
        %1023 = vmatpush1.xpose.msra.mxu0 0.0
        %1024 = vmatprep.subr.mxu0 0.0
        %1025 = vmatpush1.xpose.msra.mxu0 0.0
        %1026 = vmatprep.subr.mxu0 0.0
        %1027 = vmatpush1.xpose.msra.mxu0 0.0
        %1028 = vmatprep.subr.mxu0 0.0
        %1029 = vmatpush1.xpose.msra.mxu0 0.0
        %1030 = vmatprep.subr.mxu0 0.0
        %1031 = vmatpush1.xpose.msra.mxu0 0.0
        %1032 = vmatprep.subr.mxu0 0.0
        %1033 = vmatpush1.xpose.msra.mxu0 0.0
        %1034 = vmatprep.subr.mxu0 0.0
        %1035 = vmatpush1.xpose.msra.mxu0 0.0
        %1036 = vmatprep.subr.mxu0 0.0
        %1037 = vmatpush1.xpose.msra.mxu0 0.0
        %1038 = vmatprep.subr.mxu0 0.0
        %1039 = vmatpush1.xpose.msra.mxu0 0.0
        %1040 = vmatprep.mubr.f32.mxu0 0.0
        %1041 = vmatmul.mubr.f32.gmra.mrb[0].mxu0 %v972
        %v1042 = vpop.f32.mrb[0].mxu0
        %v1043 = vadd.f32 0.0, %v1042
        %v1044 = vpop.f32.mrb[0].mxu0
        %1045 = vdwg.mxu0
        %v1046 = vmul.f32 %v1043, 0.35355338
        %v1047 = vsel %vm468, %v1046, -inf
        %1048 = vmax.xlane.f32.xlu0 %v1047
        %v1049 = vpop.xlane.xlu0 %1048
        %v1050 = vsub.f32 %v1046, %v1049
        %v1051 = vmul.f32 %v1050, 1.442695
        %v1052 = vpow.pop %v1051
        %v1053 = vsel %vm468, %v1052, 0.0
        %1054 = vadd.xlane.f32.xlu0 %v1053
        %v1055 = vpop.xlane.xlu0 %1054
        %v1056 = vrcp.pop %v1055
        %v1057 = vmul.f32 %v1052, %v1056
        %s1058 = scalar_lea.vmem %s385, 24 [#allocation6]
        %1059 = vst.msk [vmem:[%s1058] sm:$0xff] %vm468, %v1057
        %1060 = vrot.lane.b32.xlu0 %v462, 40
        %v1061 = vpop.permute.xlu0 %1060
        %v1064 = vsel %vm468, %v1057, 0
        %1066 = vmatprep.subr.mxu0 0.0
        %1067 = vmatpush1.msra.mxu0 %v1061
        %1068 = vmatprep.subr.mxu0 0.0
        %1069 = vmatpush1.msra.mxu0 0.0
        %1070 = vmatprep.subr.mxu0 0.0
        %1071 = vmatpush1.msra.mxu0 0.0
        %1072 = vmatprep.subr.mxu0 0.0
        %1073 = vmatpush1.msra.mxu0 0.0
        %1074 = vmatprep.subr.mxu0 0.0
        %1075 = vmatpush1.msra.mxu0 0.0
        %1076 = vmatprep.subr.mxu0 0.0
        %1077 = vmatpush1.msra.mxu0 0.0
        %1078 = vmatprep.subr.mxu0 0.0
        %1079 = vmatpush1.msra.mxu0 0.0
        %1080 = vmatprep.subr.mxu0 0.0
        %1081 = vmatpush1.msra.mxu0 0.0
        %1082 = vmatprep.subr.mxu0 0.0
        %1083 = vmatpush1.msra.mxu0 0.0
        %1084 = vmatprep.subr.mxu0 0.0
        %1085 = vmatpush1.msra.mxu0 0.0
        %1086 = vmatprep.subr.mxu0 0.0
        %1087 = vmatpush1.msra.mxu0 0.0
        %1088 = vmatprep.subr.mxu0 0.0
        %1089 = vmatpush1.msra.mxu0 0.0
        %1090 = vmatprep.subr.mxu0 0.0
        %1091 = vmatpush1.msra.mxu0 0.0
        %1092 = vmatprep.subr.mxu0 0.0
        %1093 = vmatpush1.msra.mxu0 0.0
        %1094 = vmatprep.subr.mxu0 0.0
        %1095 = vmatpush1.msra.mxu0 0.0
        %1096 = vmatprep.subr.mxu0 0.0
        %1097 = vmatpush1.msra.mxu0 0.0
        %1098 = vmatprep.subr.mxu0 0.0
        %1099 = vmatpush1.msra.mxu0 0.0
        %1100 = vmatprep.subr.mxu0 0.0
        %1101 = vmatpush1.msra.mxu0 0.0
        %1102 = vmatprep.subr.mxu0 0.0
        %1103 = vmatpush1.msra.mxu0 0.0
        %1104 = vmatprep.subr.mxu0 0.0
        %1105 = vmatpush1.msra.mxu0 0.0
        %1106 = vmatprep.subr.mxu0 0.0
        %1107 = vmatpush1.msra.mxu0 0.0
        %1108 = vmatprep.subr.mxu0 0.0
        %1109 = vmatpush1.msra.mxu0 0.0
        %1110 = vmatprep.subr.mxu0 0.0
        %1111 = vmatpush1.msra.mxu0 0.0
        %1112 = vmatprep.subr.mxu0 0.0
        %1113 = vmatpush1.msra.mxu0 0.0
        %1114 = vmatprep.subr.mxu0 0.0
        %1115 = vmatpush1.msra.mxu0 0.0
        %1116 = vmatprep.subr.mxu0 0.0
        %1117 = vmatpush1.msra.mxu0 0.0
        %1118 = vmatprep.subr.mxu0 0.0
        %1119 = vmatpush1.msra.mxu0 0.0
        %1120 = vmatprep.subr.mxu0 0.0
        %1121 = vmatpush1.msra.mxu0 0.0
        %1122 = vmatprep.subr.mxu0 0.0
        %1123 = vmatpush1.msra.mxu0 0.0
        %1124 = vmatprep.subr.mxu0 0.0
        %1125 = vmatpush1.msra.mxu0 0.0
        %1126 = vmatprep.subr.mxu0 0.0
        %1127 = vmatpush1.msra.mxu0 0.0
        %1128 = vmatprep.subr.mxu0 0.0
        %1129 = vmatpush1.msra.mxu0 0.0
        %1130 = vmatprep.mubr.f32.mxu0 0.0
        %1131 = vmatmul.mubr.f32.gmra.mrb[0].mxu0 %v1064
        %v1132 = vpop.f32.mrb[0].mxu0
        %v1133 = vadd.f32 0.0, %v1132
        %v1134 = vpop.f32.mrb[0].mxu0
        %1135 = vdwg.mxu0
        %1137 = vrot.lane.b32.xlu0 %v797, 8
        %v1138 = vpop.permute.xlu0 %1137
        %1141 = vrot.lane.b32.xlu0 %v965, 16
        %v1142 = vpop.permute.xlu0 %1141
        %1145 = vrot.lane.b32.xlu0 %v1133, 24
        %v1146 = vpop.permute.xlu0 %1145
        %v1148 = vsel %vm468, %v629, %v1138
        %vm1149 = vcmask 130048
        %v1150 = vsel %vm1149, %v1148, %v1142
        %vm1151 = vcmask 195584
        %v1152 = vsel %vm1151, %v1150, %v1146
        %v1153 = vld [vmem:[%s2] sm:$0xff]
        %v1154 = vld [vmem:[%s2 + $0x8] sm:$0xff]
        %v1155 = vld [vmem:[%s2 + $0x10] sm:$0xff]
        %v1156 = vld [vmem:[%s2 + $0x18] sm:$0xff]
        %v1158 = vsel %vm391, %v1152, 0
        %1160 = vmatprep.subr.mxu0 0.0
        %1161 = vmatpush1.msra.mxu0 %v1153
        %1162 = vmatprep.subr.mxu0 0.0
        %1163 = vmatpush1.msra.mxu0 %v1154
        %1164 = vmatprep.subr.mxu0 0.0
        %1165 = vmatpush1.msra.mxu0 %v1155
        %1166 = vmatprep.subr.mxu0 0.0
        %1167 = vmatpush1.msra.mxu0 %v1156
        %1168 = vmatprep.subr.mxu0 0.0
        %1169 = vmatpush1.msra.mxu0 0.0
        %1170 = vmatprep.subr.mxu0 0.0
        %1171 = vmatpush1.msra.mxu0 0.0
        %1172 = vmatprep.subr.mxu0 0.0
        %1173 = vmatpush1.msra.mxu0 0.0
        %1174 = vmatprep.subr.mxu0 0.0
        %1175 = vmatpush1.msra.mxu0 0.0
        %1176 = vmatprep.subr.mxu0 0.0
        %1177 = vmatpush1.msra.mxu0 0.0
        %1178 = vmatprep.subr.mxu0 0.0
        %1179 = vmatpush1.msra.mxu0 0.0
        %1180 = vmatprep.subr.mxu0 0.0
        %1181 = vmatpush1.msra.mxu0 0.0
        %1182 = vmatprep.subr.mxu0 0.0
        %1183 = vmatpush1.msra.mxu0 0.0
        %1184 = vmatprep.subr.mxu0 0.0
        %1185 = vmatpush1.msra.mxu0 0.0
        %1186 = vmatprep.subr.mxu0 0.0
        %1187 = vmatpush1.msra.mxu0 0.0
        %1188 = vmatprep.subr.mxu0 0.0
        %1189 = vmatpush1.msra.mxu0 0.0
        %1190 = vmatprep.subr.mxu0 0.0
        %1191 = vmatpush1.msra.mxu0 0.0
        %1192 = vmatprep.subr.mxu0 0.0
        %1193 = vmatpush1.msra.mxu0 0.0
        %1194 = vmatprep.subr.mxu0 0.0
        %1195 = vmatpush1.msra.mxu0 0.0
        %1196 = vmatprep.subr.mxu0 0.0
        %1197 = vmatpush1.msra.mxu0 0.0
        %1198 = vmatprep.subr.mxu0 0.0
        %1199 = vmatpush1.msra.mxu0 0.0
        %1200 = vmatprep.subr.mxu0 0.0
        %1201 = vmatpush1.msra.mxu0 0.0
        %1202 = vmatprep.subr.mxu0 0.0
        %1203 = vmatpush1.msra.mxu0 0.0
        %1204 = vmatprep.subr.mxu0 0.0
        %1205 = vmatpush1.msra.mxu0 0.0
        %1206 = vmatprep.subr.mxu0 0.0
        %1207 = vmatpush1.msra.mxu0 0.0
        %1208 = vmatprep.subr.mxu0 0.0
        %1209 = vmatpush1.msra.mxu0 0.0
        %1210 = vmatprep.subr.mxu0 0.0
        %1211 = vmatpush1.msra.mxu0 0.0
        %1212 = vmatprep.subr.mxu0 0.0
        %1213 = vmatpush1.msra.mxu0 0.0
        %1214 = vmatprep.subr.mxu0 0.0
        %1215 = vmatpush1.msra.mxu0 0.0
        %1216 = vmatprep.subr.mxu0 0.0
        %1217 = vmatpush1.msra.mxu0 0.0
        %1218 = vmatprep.subr.mxu0 0.0
        %1219 = vmatpush1.msra.mxu0 0.0
        %1220 = vmatprep.subr.mxu0 0.0
        %1221 = vmatpush1.msra.mxu0 0.0
        %1222 = vmatprep.subr.mxu0 0.0
        %1223 = vmatpush1.msra.mxu0 0.0
        %1224 = vmatprep.mubr.f32.mxu0 0.0
        %1225 = vmatmul.mubr.f32.gmra.mrb[0].mxu0 %v1158
        %v1226 = vpop.f32.mrb[0].mxu0
        %v1227 = vadd.f32 %v386, %v1226
        %v1228 = vpop.f32.mrb[0].mxu0
        %1229 = vdwg.mxu0
        %v1230 = vsel %vm391, %v1227, 0.0
        %1231 = vadd.xlane.f32.xlu0 %v1230
        %v1232 = vpop.xlane.xlu0 %1231
        %v1233 = vrcp.pop 32.0
        %v1234 = vmul.f32 %v1232, %v1233
        %v1235 = vsub.f32 %v1227, %v1234
        %v1236 = vmul.f32 %v1235, %v1235
        %v1237 = vsel %vm391, %v1236, 0.0
        %1238 = vadd.xlane.f32.xlu0 %v1237
        %v1239 = vpop.xlane.xlu0 %1238
        %v1240 = vmul.f32 %v1239, %v1233
        %v1241 = vadd.f32 %v1240, 1e-05
        %v1242 = vrsqrt.pop %v1241
        %v1243 = vmul.f32 %v1235, %v1242
        %v1244 = vld [vmem:[%s3] sm:$0x1]
        %v1246 = vlaneseq
        %v1247 = vshrl.u32 %v1246, 7
        %v1248 = vsub.s32 0, %v1247
        %v1249 = vrot.slane %v1244, %v1248
        %v1251 = vmul.f32 %v1243, %v1249
        %v1252 = vld [vmem:[%s4] sm:$0x1]
        %v1254 = vlaneseq
        %v1255 = vshrl.u32 %v1254, 7
        %v1256 = vsub.s32 0, %v1255
        %v1257 = vrot.slane %v1252, %v1256
        %v1259 = vadd.f32 %v1251, %v1257
        %v1260 = vld [vmem:[%s5] sm:$0xff]
        %v1261 = vld [vmem:[%s5 + $0x8] sm:$0xff]
        %v1262 = vld [vmem:[%s5 + $0x10] sm:$0xff]
        %v1263 = vld [vmem:[%s5 + $0x18] sm:$0xff]
        %v1265 = vsel %vm391, %v1259, 0
        %1267 = vmatprep.subr.mxu0 0.0
        %1268 = vmatpush1.msra.mxu0 %v1260
        %1269 = vmatprep.subr.mxu0 0.0
        %1270 = vmatpush1.msra.mxu0 %v1261
        %1271 = vmatprep.subr.mxu0 0.0
        %1272 = vmatpush1.msra.mxu0 %v1262
        %1273 = vmatprep.subr.mxu0 0.0
        %1274 = vmatpush1.msra.mxu0 %v1263
        %1275 = vmatprep.subr.mxu0 0.0
        %1276 = vmatpush1.msra.mxu0 0.0
        %1277 = vmatprep.subr.mxu0 0.0
        %1278 = vmatpush1.msra.mxu0 0.0
        %1279 = vmatprep.subr.mxu0 0.0
        %1280 = vmatpush1.msra.mxu0 0.0
        %1281 = vmatprep.subr.mxu0 0.0
        %1282 = vmatpush1.msra.mxu0 0.0
        %1283 = vmatprep.subr.mxu0 0.0
        %1284 = vmatpush1.msra.mxu0 0.0
        %1285 = vmatprep.subr.mxu0 0.0
        %1286 = vmatpush1.msra.mxu0 0.0
        %1287 = vmatprep.subr.mxu0 0.0
        %1288 = vmatpush1.msra.mxu0 0.0
        %1289 = vmatprep.subr.mxu0 0.0
        %1290 = vmatpush1.msra.mxu0 0.0
        %1291 = vmatprep.subr.mxu0 0.0
        %1292 = vmatpush1.msra.mxu0 0.0
        %1293 = vmatprep.subr.mxu0 0.0
        %1294 = vmatpush1.msra.mxu0 0.0
        %1295 = vmatprep.subr.mxu0 0.0
        %1296 = vmatpush1.msra.mxu0 0.0
        %1297 = vmatprep.subr.mxu0 0.0
        %1298 = vmatpush1.msra.mxu0 0.0
        %1299 = vmatprep.subr.mxu0 0.0
        %1300 = vmatpush1.msra.mxu0 0.0
        %1301 = vmatprep.subr.mxu0 0.0
        %1302 = vmatpush1.msra.mxu0 0.0
        %1303 = vmatprep.subr.mxu0 0.0
        %1304 = vmatpush1.msra.mxu0 0.0
        %1305 = vmatprep.subr.mxu0 0.0
        %1306 = vmatpush1.msra.mxu0 0.0
        %1307 = vmatprep.subr.mxu0 0.0
        %1308 = vmatpush1.msra.mxu0 0.0
        %1309 = vmatprep.subr.mxu0 0.0
        %1310 = vmatpush1.msra.mxu0 0.0
        %1311 = vmatprep.subr.mxu0 0.0
        %1312 = vmatpush1.msra.mxu0 0.0
        %1313 = vmatprep.subr.mxu0 0.0
        %1314 = vmatpush1.msra.mxu0 0.0
        %1315 = vmatprep.subr.mxu0 0.0
        %1316 = vmatpush1.msra.mxu0 0.0
        %1317 = vmatprep.subr.mxu0 0.0
        %1318 = vmatpush1.msra.mxu0 0.0
        %1319 = vmatprep.subr.mxu0 0.0
        %1320 = vmatpush1.msra.mxu0 0.0
        %1321 = vmatprep.subr.mxu0 0.0
        %1322 = vmatpush1.msra.mxu0 0.0
        %1323 = vmatprep.subr.mxu0 0.0
        %1324 = vmatpush1.msra.mxu0 0.0
        %1325 = vmatprep.subr.mxu0 0.0
        %1326 = vmatpush1.msra.mxu0 0.0
        %1327 = vmatprep.subr.mxu0 0.0
        %1328 = vmatpush1.msra.mxu0 0.0
        %1329 = vmatprep.subr.mxu0 0.0
        %1330 = vmatpush1.msra.mxu0 0.0
        %1331 = vmatprep.mubr.f32.mxu0 0.0
        %1332 = vmatmul.mubr.f32.gmra.mrb[0].mxu0 %v1265
        %v1333 = vpop.f32.mrb[0].mxu0
        %v1334 = vadd.f32 0.0, %v1333
        %v1335 = vpop.f32.mrb[0].mxu0
        %1336 = vdwg.mxu0
        %v1337 = vmax.f32 %v1334, 0.0
        %v1338 = vld [vmem:[%s6] sm:$0xff]
        %v1339 = vld [vmem:[%s6 + $0x8] sm:$0xff]
        %v1340 = vld [vmem:[%s6 + $0x10] sm:$0xff]
        %v1341 = vld [vmem:[%s6 + $0x18] sm:$0xff]
        %v1342 = vld [vmem:[%s6 + $0x20] sm:$0xff]
        %v1343 = vld [vmem:[%s6 + $0x28] sm:$0xff]
        %v1344 = vld [vmem:[%s6 + $0x30] sm:$0xff]
        %v1345 = vld [vmem:[%s6 + $0x38] sm:$0xff]
        %vm1346 = vcmask 523264
        %v1348 = vsel %vm1346, %v1337, 0
        %1350 = vmatprep.subr.mxu0 0.0
        %1351 = vmatpush1.msra.mxu0 %v1338
        %1352 = vmatprep.subr.mxu0 0.0
        %1353 = vmatpush1.msra.mxu0 %v1339
        %1354 = vmatprep.subr.mxu0 0.0
        %1355 = vmatpush1.msra.mxu0 %v1340
        %1356 = vmatprep.subr.mxu0 0.0
        %1357 = vmatpush1.msra.mxu0 %v1341
        %1358 = vmatprep.subr.mxu0 0.0
        %1359 = vmatpush1.msra.mxu0 %v1342
        %1360 = vmatprep.subr.mxu0 0.0
        %1361 = vmatpush1.msra.mxu0 %v1343
        %1362 = vmatprep.subr.mxu0 0.0
        %1363 = vmatpush1.msra.mxu0 %v1344
        %1364 = vmatprep.subr.mxu0 0.0
        %1365 = vmatpush1.msra.mxu0 %v1345
        %1366 = vmatprep.subr.mxu0 0.0
        %1367 = vmatpush1.msra.mxu0 0.0
        %1368 = vmatprep.subr.mxu0 0.0
        %1369 = vmatpush1.msra.mxu0 0.0
        %1370 = vmatprep.subr.mxu0 0.0
        %1371 = vmatpush1.msra.mxu0 0.0
        %1372 = vmatprep.subr.mxu0 0.0
        %1373 = vmatpush1.msra.mxu0 0.0
        %1374 = vmatprep.subr.mxu0 0.0
        %1375 = vmatpush1.msra.mxu0 0.0
        %1376 = vmatprep.subr.mxu0 0.0
        %1377 = vmatpush1.msra.mxu0 0.0
        %1378 = vmatprep.subr.mxu0 0.0
        %1379 = vmatpush1.msra.mxu0 0.0
        %1380 = vmatprep.subr.mxu0 0.0
        %1381 = vmatpush1.msra.mxu0 0.0
        %1382 = vmatprep.subr.mxu0 0.0
        %1383 = vmatpush1.msra.mxu0 0.0
        %1384 = vmatprep.subr.mxu0 0.0
        %1385 = vmatpush1.msra.mxu0 0.0
        %1386 = vmatprep.subr.mxu0 0.0
        %1387 = vmatpush1.msra.mxu0 0.0
        %1388 = vmatprep.subr.mxu0 0.0
        %1389 = vmatpush1.msra.mxu0 0.0
        %1390 = vmatprep.subr.mxu0 0.0
        %1391 = vmatpush1.msra.mxu0 0.0
        %1392 = vmatprep.subr.mxu0 0.0
        %1393 = vmatpush1.msra.mxu0 0.0
        %1394 = vmatprep.subr.mxu0 0.0
        %1395 = vmatpush1.msra.mxu0 0.0
        %1396 = vmatprep.subr.mxu0 0.0
        %1397 = vmatpush1.msra.mxu0 0.0
        %1398 = vmatprep.subr.mxu0 0.0
        %1399 = vmatpush1.msra.mxu0 0.0
        %1400 = vmatprep.subr.mxu0 0.0
        %1401 = vmatpush1.msra.mxu0 0.0
        %1402 = vmatprep.subr.mxu0 0.0
        %1403 = vmatpush1.msra.mxu0 0.0
        %1404 = vmatprep.subr.mxu0 0.0
        %1405 = vmatpush1.msra.mxu0 0.0
        %1406 = vmatprep.subr.mxu0 0.0
        %1407 = vmatpush1.msra.mxu0 0.0
        %1408 = vmatprep.subr.mxu0 0.0
        %1409 = vmatpush1.msra.mxu0 0.0
        %1410 = vmatprep.subr.mxu0 0.0
        %1411 = vmatpush1.msra.mxu0 0.0
        %1412 = vmatprep.subr.mxu0 0.0
        %1413 = vmatpush1.msra.mxu0 0.0
        %1414 = vmatprep.mubr.f32.mxu0 0.0
        %1415 = vmatmul.mubr.f32.gmra.mrb[0].mxu0 %v1348
        %v1416 = vpop.f32.mrb[0].mxu0
        %v1417 = vadd.f32 %v1259, %v1416
        %v1418 = vpop.f32.mrb[0].mxu0
        %1419 = vdwg.mxu0
        %v1420 = vsel %vm391, %v1417, 0.0
        %1421 = vadd.xlane.f32.xlu0 %v1420
        %v1422 = vpop.xlane.xlu0 %1421
        %v1423 = vmul.f32 %v1422, %v1233
        %v1424 = vsub.f32 %v1417, %v1423
        %v1425 = vmul.f32 %v1424, %v1424
        %v1426 = vsel %vm391, %v1425, 0.0
        %1427 = vadd.xlane.f32.xlu0 %v1426
        %v1428 = vpop.xlane.xlu0 %1427
        %v1429 = vmul.f32 %v1428, %v1233
        %v1430 = vadd.f32 %v1429, 1e-05
        %v1431 = vrsqrt.pop %v1430
        %v1432 = vmul.f32 %v1424, %v1431
        %v1433 = vld [vmem:[%s7] sm:$0x1]
        %v1435 = vlaneseq
        %v1436 = vshrl.u32 %v1435, 7
        %v1437 = vsub.s32 0, %v1436
        %v1438 = vrot.slane %v1433, %v1437
        %v1440 = vmul.f32 %v1432, %v1438
        %v1441 = vld [vmem:[%s8] sm:$0x1]
        %v1443 = vlaneseq
        %v1444 = vshrl.u32 %v1443, 7
        %v1445 = vsub.s32 0, %v1444
        %v1446 = vrot.slane %v1441, %v1445
        %v1448 = vadd.f32 %v1440, %v1446
        %1449 = vst.msk [vmem:[%s378] sm:$0xff] %vm391, %v1448
        %s1450 = sand.u32 %s233, 1
        %s1451 = scalar_lea.sflag [#allocation4], %s1450
        %s1452 = sand.u32 %s233, 1
        %s1453 = smul.addr %s1452, 8
        %s1454 = scalar_lea.vmem [#allocation5], %s1453
        %s1455 = sand.u32 %s259, 1
        %s1456 = scalar_lea.sflag [#allocation7], %s1455
        %s1457 = sand.u32 %s259, 1
        %s1458 = smul.addr %s1457, 32
        %s1459 = scalar_lea.vmem [#allocation6], %s1458
        // Predicated region
        $region61: #{tpu_custom_call.1} parent=55 // pred_check
          %p1460 = pneg %p243
        $region62: #{tpu_custom_call.1} parent=55 // pred_check_branch
          %1462 = sbr.rel (%p1460) target = $region64
        $region63: #{tpu_custom_call.1} parent=55 // pred_region
          %s1464 = ssub.s32 128, 128
          %1465 = vsyncadd %s1451, %s1464
          %s1466 = smul.addr %s31, 128
          %s1467 = scalar_lea.hbm %s9, %s1466
          %s1469 = sshll.u32 %s1454, 4
          %s1470 = int_to_ptr.vmem [resolvable:$true] %s1469
          %1472 = dma.vmem_to_hbm [thread:$0]  %s1470, 128, %s1467, %s1451
        $region64: #{tpu_custom_call.1} parent=55 // pred_fallthru
          _
        // Predicated region
        $region65: #{tpu_custom_call.1} parent=55 // pred_check
          %p1473 = pneg %p269
        $region66: #{tpu_custom_call.1} parent=55 // pred_check_branch
          %1475 = sbr.rel (%p1473) target = $region68
        $region67: #{tpu_custom_call.1} parent=55 // pred_region
          %s1477 = ssub.s32 512, 512
          %1478 = vsyncadd %s1456, %s1477
          %s1479 = smul.addr %s31, 4
          %s1480 = smul.addr %s1479, 128
          %s1481 = scalar_lea.hbm %s10, %s1480
          %s1482 = sshll.u32 %s1459, 4
          %s1483 = int_to_ptr.vmem [resolvable:$true] %s1482
          %1488 = dma.vmem_to_hbm [thread:$0]  %s1483, 512, %s1481, %s1456, 128, 128, 8
        $region68: #{tpu_custom_call.1} parent=55 // pred_fallthru
          _
      $region56: #{tpu_custom_call.1} parent=5 // pred_fallthru
        _
      %p1489 = scmp.le.s32.totalorder 2, %s26
      // Predicated region
      $region69: #{tpu_custom_call.1} parent=5 // pred_check
        %p1490 = pneg %p1489
      $region70: #{tpu_custom_call.1} parent=5 // pred_check_branch
        %1492 = sbr.rel (%p1490) target = $region72
      $region71: #{tpu_custom_call.1} parent=5 // pred_region
        %s1493 = ssub.s32 %s26, 2
        // Predicated region
        $region73: #{tpu_custom_call.1} parent=71 // pred_check
          %p1494 = pneg %p249
        $region74: #{tpu_custom_call.1} parent=71 // pred_check_branch
          %1496 = sbr.rel (%p1494) target = $region76
        $region75: #{tpu_custom_call.1} parent=71 // pred_region
          %s1497 = sand.u32 %s234, 1
          %s1498 = scalar_lea.sflag [#allocation4], %s1497
          %s1499 = sand.u32 %s234, 1
          %s1500 = smul.addr %s1499, 8
          %s1501 = scalar_lea.vmem [#allocation5], %s1500
          %1502 = dma.done %s1498, 128
        $region76: #{tpu_custom_call.1} parent=71 // pred_fallthru
          _
        // Predicated region
        $region77: #{tpu_custom_call.1} parent=71 // pred_check
          %p1503 = pneg %p275
        $region78: #{tpu_custom_call.1} parent=71 // pred_check_branch
          %1505 = sbr.rel (%p1503) target = $region80
        $region79: #{tpu_custom_call.1} parent=71 // pred_region
          %s1506 = sand.u32 %s260, 1
          %s1507 = scalar_lea.sflag [#allocation7], %s1506
          %s1508 = sand.u32 %s260, 1
          %s1509 = smul.addr %s1508, 32
          %s1510 = scalar_lea.vmem [#allocation6], %s1509
          %1511 = dma.done %s1507, 512
        $region80: #{tpu_custom_call.1} parent=71 // pred_fallthru
          _
      $region72: #{tpu_custom_call.1} parent=5 // pred_fallthru
        _
    $region6: #{tpu_custom_call.1} parent=1 // loop_footer
      %s30 = sadd.s32 1, %s26
    $region7: #{tpu_custom_call.1} parent=1 // loop_footer_branch
      %25 = sbr.rel target = $region3
    $region8: #{tpu_custom_call.1} parent=1 // loop_exit
      _
    %1512 = vsyncpa [#allocation3], 1
    %s1513 = scalar_lea.sflag [#allocation3], 1
    %1514 = vsyncpa %s1513, 1
    %1515 = vsyncpa [#allocation4], 1
    %s1516 = scalar_lea.sflag [#allocation4], 1
    %1517 = vsyncpa %s1516, 1
    %1518 = vsyncpa [#allocation7], 1
    %s1519 = scalar_lea.sflag [#allocation7], 1
    %1520 = vsyncpa %s1519, 1

</llo_original>
